<compile_context>
chip_gen: v5e
topology: v5e:2x2
jax: 0.10.0
libtpu: 0.0.40
codegen_flags: <defaults>
</compile_context>

<pallas_src>
import functools
import math

import jax
import jax.numpy as jnp
from jax.experimental import pallas as pl
from jax.experimental.pallas import tpu as pltpu


# --------------------------------------------------------------------------
# Fused RCAB kernel (single invocation, batch folded into M)
# --------------------------------------------------------------------------
def _rcab_kernel(xpad_ref, xres_ref, w1_ref, b1_ref, w2_ref, b2_ref, mask_ref,
                 o_ref, *, N, H, Hp, WC, K, p, res_scale):
    """xpad_ref : (N*Hp + 2p, WC) bf16 — batch stacked with per-image zero
                  height halos plus p global guard rows top/bottom so every
                  kh-shifted window is a plain static slice.
       xres_ref : (N*H, WC) f32 — unpadded, sublane-aligned residual input.
       wN_ref   : (K*WC, WC) bf16 — width block-Toeplitz conv weights.
       bN_ref   : (1, WC) f32 — channel bias tiled across width.
       mask_ref : (N*Hp, 1) f32 — 1 on interior rows, 0 on per-image halos.
       o_ref    : (N*H, WC) f32 output."""
    Npad = N * Hp
    xpad = xpad_ref[...]                      # (Npad + 2p, WC) bf16
    mask = mask_ref[...]                      # (Npad, 1) f32

    def conv(lhs, w_ref):
        # K accumulating MXU dots, M = N*Hp rows each; weight slices are
        # sublane-aligned (kh*WC is a multiple of WC >= 256).
        acc = None
        for kh in range(K):
            a = lhs[kh:kh + Npad, :]
            z = jnp.dot(a, w_ref[kh * WC:(kh + 1) * WC, :],
                        preferred_element_type=jnp.float32)
            acc = z if acc is None else acc + z
        return acc                            # (Npad, WC) f32; interior rows valid

    # ---- conv1 -> bias -> ReLU (f32 epilogue), zero per-image halo rows ----
    y1 = jnp.maximum(conv(xpad, w1_ref) + b1_ref[...], 0.0) * mask
    zpad = jnp.zeros((p, WC), jnp.bfloat16)
    mid = jnp.concatenate([zpad, y1.astype(jnp.bfloat16), zpad], axis=0)

    # ---- conv2 -> bias -> res_scale -> + x ---------------------------------
    y2 = conv(mid, w2_ref) + b2_ref[...]
    if res_scale != 1.0:                      # statically skipped at 1.0
        y2 = y2 * res_scale
    for n in range(N):                        # per-image interior rows
        r0 = n * Hp + p
        o_ref[n * H:(n + 1) * H, :] = (
            y2[r0:r0 + H, :] + xres_ref[n * H:(n + 1) * H, :]
        ).astype(o_ref.dtype)


# --------------------------------------------------------------------------
# Weight expansion: "same"-padded conv along width -> block-Toeplitz matrix
# --------------------------------------------------------------------------
def _toeplitz_weight(w, W):
    """w: (K, K, Cin, Cout) HWIO  ->  (K*W*Cin, W*Cout) so that
       out[h, wo*Cout+co] = sum_{kh,wi,ci} rows[h+kh-p, wi*Cin+ci] * Wbig[...],
       with width zero-padding encoded as zero entries."""
    K, _, Cin, Cout = w.shape
    p = K // 2
    w = w.astype(jnp.float32)
    wi = jnp.arange(W)
    wo = jnp.arange(W)
    kw = wi[:, None] - wo[None, :] + p                     # (W_in, W_out)
    valid = (kw >= 0) & (kw < K)
    kw_c = jnp.clip(kw, 0, K - 1)
    T = w[:, kw_c, :, :]                                   # (K, Wi, Wo, Cin, Cout)
    T = T * valid[None, :, :, None, None].astype(jnp.float32)
    T = jnp.transpose(T, (0, 1, 3, 2, 4))                  # (K, Wi, Cin, Wo, Cout)
    return T.reshape(K * W * Cin, W * Cout)


# --------------------------------------------------------------------------
# Wrapper
# --------------------------------------------------------------------------
def rcab_forward(x_nhwc, params, *, res_scale=1.0):
    """Fused RCAB forward.  x_nhwc: (N, H, W, C) float32."""
    x_nhwc = x_nhwc.astype(jnp.float32)
    N, H, W, C = x_nhwc.shape
    w1, b1 = params["w1"], params["b1"]
    w2, b2 = params["w2"], params["b2"]
    K = w1.shape[0]
    p = K // 2
    Hp = H + 2 * p
    WC = W * C
    Npad = N * Hp

    # One-time layout / parameter prep.
    x2d = x_nhwc.reshape(N, H, WC)                          # row-major no-op
    xpad = jnp.pad(x2d, ((0, 0), (p, p), (0, 0))).reshape(Npad, WC)
    xpad2 = jnp.pad(xpad, ((p, p), (0, 0))).astype(jnp.bfloat16)  # + guard rows
    xres = x2d.reshape(N * H, WC)                           # f32 aligned residual

    w1_big = _toeplitz_weight(w1, W).astype(jnp.bfloat16)   # (K*WC, WC)
    w2_big = _toeplitz_weight(w2, W).astype(jnp.bfloat16)
    b1_t = jnp.tile(b1.astype(jnp.float32), W).reshape(1, WC)
    b2_t = jnp.tile(b2.astype(jnp.float32), W).reshape(1, WC)

    hpos = jnp.arange(Npad) % Hp
    mask = ((hpos >= p) & (hpos < p + H)).astype(jnp.float32).reshape(Npad, 1)

    kernel = functools.partial(_rcab_kernel, N=N, H=H, Hp=Hp, WC=WC, K=K, p=p,
                               res_scale=float(res_scale))
    vmem_spec = pl.BlockSpec(memory_space=pltpu.MemorySpace.VMEM)
    out2d = pl.pallas_call(
        kernel,
        out_shape=jax.ShapeDtypeStruct((N * H, WC), jnp.float32),
        in_specs=[vmem_spec] * 7,
        out_specs=vmem_spec,
    )(xpad2, xres, w1_big, b1_t, w2_big, b2_t, mask)
    return out2d.reshape(N, H, W, C)


# --------------------------------------------------------------------------
# Pure-JAX reference (for correctness check)
# --------------------------------------------------------------------------
def rcab_reference(x_nhwc, params, *, res_scale=1.0):
    dn = ("NHWC", "HWIO", "NHWC")
    hi = jax.lax.Precision.HIGHEST
    y = jax.lax.conv_general_dilated(x_nhwc, params["w1"], (1, 1), "SAME",
                                     dimension_numbers=dn, precision=hi)
    y = jnp.maximum(y + params["b1"], 0.0)
    y = jax.lax.conv_general_dilated(y, params["w2"], (1, 1), "SAME",
                                     dimension_numbers=dn, precision=hi)
    y = y + params["b2"]
    return y * res_scale + x_nhwc


# --------------------------------------------------------------------------
# Parameters (synthetic, deterministic, expanded R2Conv shapes)
# --------------------------------------------------------------------------
def init_rcab_params(key, kernel_size, channels):
    k1w, k1b, k2w, k2b = jax.random.split(key, 4)
    fan_in = kernel_size * kernel_size * channels
    s = 0.1 / math.sqrt(fan_in)
    shp = (kernel_size, kernel_size, channels, channels)
    return {
        "w1": jax.random.normal(k1w, shp, jnp.float32) * s,
        "b1": jax.random.normal(k1b, (channels,), jnp.float32) * 0.01,
        "w2": jax.random.normal(k2w, shp, jnp.float32) * s,
        "b2": jax.random.normal(k2b, (channels,), jnp.float32) * 0.01,
    }


# --------------------------------------------------------------------------
# Main
# --------------------------------------------------------------------------
if __name__ == "__main__":
    n_feat = 4
    tranNum = 4
    C = n_feat * tranNum          # expanded regular-repr channel count = 16
    kernel_size = 5
    res_scale = 1.0               # RCAB default; multiply statically skipped
    N, H, W = 2, 16, 16

    key = jax.random.PRNGKey(0)
    kx, kp = jax.random.split(key)

    # PyTorch-style NCHW input, converted to the kernel's NHWC layout.
    x_nchw = jax.random.uniform(kx, (N, C, H, W), jnp.float32)
    x_nhwc = jnp.transpose(x_nchw, (0, 2, 3, 1))

    params = init_rcab_params(kp, kernel_size, C)

    out_nhwc = rcab_forward(x_nhwc, params, res_scale=res_scale)
    jax.block_until_ready(out_nhwc)

    ref = rcab_reference(x_nhwc, params, res_scale=res_scale)
    err = float(jnp.max(jnp.abs(out_nhwc - ref)))

    assert out_nhwc.shape == (N, H, W, C), out_nhwc.shape
    assert bool(jnp.all(jnp.isfinite(out_nhwc)))
    # bf16 MXU operands with f32 accumulation: tolerance loosened per review.
    assert err < 1e-2, f"max abs err vs reference = {err}"

    out_nchw = jnp.transpose(out_nhwc, (0, 3, 1, 2))
    jax.block_until_ready(out_nchw)
    print("KERNEL_OK")
</pallas_src>

<mosaic_0001>
module attributes {stable_mosaic.version = 11 : i64} {
  func.func @_rcab_kernel(%arg0: memref<44x256xbf16, #tpu.memory_space<vmem>>, %arg1: memref<32x256xf32, #tpu.memory_space<vmem>>, %arg2: memref<1280x256xbf16, #tpu.memory_space<vmem>>, %arg3: memref<1x256xf32, #tpu.memory_space<vmem>>, %arg4: memref<1280x256xbf16, #tpu.memory_space<vmem>>, %arg5: memref<1x256xf32, #tpu.memory_space<vmem>>, %arg6: memref<40x1xf32, #tpu.memory_space<vmem>>, %arg7: memref<32x256xf32, #tpu.memory_space<vmem>>) attributes {dimension_semantics = [], scalar_prefetch = 0 : i64, scratch_operands = 0 : i64, tpu.core_type = #tpu.core_type<tc>} {
    %c0 = arith.constant 0 : index
    %c0_0 = arith.constant 0 : index
    %0 = vector.load %arg0[%c0, %c0_0] : memref<44x256xbf16, #tpu.memory_space<vmem>>, vector<44x256xbf16>
    %c0_1 = arith.constant 0 : index
    %c0_2 = arith.constant 0 : index
    %1 = vector.load %arg6[%c0_1, %c0_2] : memref<40x1xf32, #tpu.memory_space<vmem>>, vector<40x1xf32>
    %2 = vector.extract_strided_slice %0 {offsets = [0, 0], sizes = [40, 256], strides = [1, 1]} : vector<44x256xbf16> to vector<40x256xbf16>
    %c0_3 = arith.constant 0 : index
    %c0_4 = arith.constant 0 : index
    %3 = vector.load %arg2[%c0_3, %c0_4] : memref<1280x256xbf16, #tpu.memory_space<vmem>>, vector<256x256xbf16>
    %cst = arith.constant dense<0.000000e+00> : vector<40x256xf32>
    %4 = tpu.matmul %2, %3, %cst {dimension_numbers = #tpu.dot_dimension_numbers<[1], [0], [0], [1], [0, 0, 1, 1], [], []>} : vector<40x256xbf16>, vector<256x256xbf16>, vector<40x256xf32> -> vector<40x256xf32>
    %5 = vector.extract_strided_slice %0 {offsets = [1, 0], sizes = [40, 256], strides = [1, 1]} : vector<44x256xbf16> to vector<40x256xbf16>
    %c256 = arith.constant 256 : index
    %c0_5 = arith.constant 0 : index
    %6 = vector.load %arg2[%c256, %c0_5] : memref<1280x256xbf16, #tpu.memory_space<vmem>>, vector<256x256xbf16>
    %cst_6 = arith.constant dense<0.000000e+00> : vector<40x256xf32>
    %7 = tpu.matmul %5, %6, %cst_6 {dimension_numbers = #tpu.dot_dimension_numbers<[1], [0], [0], [1], [0, 0, 1, 1], [], []>} : vector<40x256xbf16>, vector<256x256xbf16>, vector<40x256xf32> -> vector<40x256xf32>
    %8 = arith.addf %4, %7 : vector<40x256xf32>
    %9 = vector.extract_strided_slice %0 {offsets = [2, 0], sizes = [40, 256], strides = [1, 1]} : vector<44x256xbf16> to vector<40x256xbf16>
    %c512 = arith.constant 512 : index
    %c0_7 = arith.constant 0 : index
    %10 = vector.load %arg2[%c512, %c0_7] : memref<1280x256xbf16, #tpu.memory_space<vmem>>, vector<256x256xbf16>
    %cst_8 = arith.constant dense<0.000000e+00> : vector<40x256xf32>
    %11 = tpu.matmul %9, %10, %cst_8 {dimension_numbers = #tpu.dot_dimension_numbers<[1], [0], [0], [1], [0, 0, 1, 1], [], []>} : vector<40x256xbf16>, vector<256x256xbf16>, vector<40x256xf32> -> vector<40x256xf32>
    %12 = arith.addf %8, %11 : vector<40x256xf32>
    %13 = vector.extract_strided_slice %0 {offsets = [3, 0], sizes = [40, 256], strides = [1, 1]} : vector<44x256xbf16> to vector<40x256xbf16>
    %c768 = arith.constant 768 : index
    %c0_9 = arith.constant 0 : index
    %14 = vector.load %arg2[%c768, %c0_9] : memref<1280x256xbf16, #tpu.memory_space<vmem>>, vector<256x256xbf16>
    %cst_10 = arith.constant dense<0.000000e+00> : vector<40x256xf32>
    %15 = tpu.matmul %13, %14, %cst_10 {dimension_numbers = #tpu.dot_dimension_numbers<[1], [0], [0], [1], [0, 0, 1, 1], [], []>} : vector<40x256xbf16>, vector<256x256xbf16>, vector<40x256xf32> -> vector<40x256xf32>
    %16 = arith.addf %12, %15 : vector<40x256xf32>
    %17 = vector.extract_strided_slice %0 {offsets = [4, 0], sizes = [40, 256], strides = [1, 1]} : vector<44x256xbf16> to vector<40x256xbf16>
    %c1024 = arith.constant 1024 : index
    %c0_11 = arith.constant 0 : index
    %18 = vector.load %arg2[%c1024, %c0_11] : memref<1280x256xbf16, #tpu.memory_space<vmem>>, vector<256x256xbf16>
    %cst_12 = arith.constant dense<0.000000e+00> : vector<40x256xf32>
    %19 = tpu.matmul %17, %18, %cst_12 {dimension_numbers = #tpu.dot_dimension_numbers<[1], [0], [0], [1], [0, 0, 1, 1], [], []>} : vector<40x256xbf16>, vector<256x256xbf16>, vector<40x256xf32> -> vector<40x256xf32>
    %20 = arith.addf %16, %19 : vector<40x256xf32>
    %c0_13 = arith.constant 0 : index
    %c0_14 = arith.constant 0 : index
    %21 = vector.load %arg3[%c0_13, %c0_14] : memref<1x256xf32, #tpu.memory_space<vmem>>, vector<1x256xf32>
    %22 = vector.broadcast %21 : vector<1x256xf32> to vector<40x256xf32>
    %23 = arith.addf %20, %22 : vector<40x256xf32>
    %cst_15 = arith.constant 0.000000e+00 : f32
    %24 = vector.broadcast %cst_15 : f32 to vector<40x256xf32>
    %25 = arith.maximumf %23, %24 : vector<40x256xf32>
    %26 = vector.broadcast %1 : vector<40x1xf32> to vector<40x256xf32>
    %27 = arith.mulf %25, %26 : vector<40x256xf32>
    %cst_16 = arith.constant 0.000000e+00 : bf16
    %28 = vector.broadcast %cst_16 : bf16 to vector<2x256xbf16>
    %29 = arith.truncf %27 : vector<40x256xf32> to vector<40x256xbf16>
    %30 = tpu.concatenate %28, %29, %28 in 0 : vector<2x256xbf16>, vector<40x256xbf16>, vector<2x256xbf16> -> vector<44x256xbf16>
    %31 = vector.extract_strided_slice %30 {offsets = [0, 0], sizes = [40, 256], strides = [1, 1]} : vector<44x256xbf16> to vector<40x256xbf16>
    %c0_17 = arith.constant 0 : index
    %c0_18 = arith.constant 0 : index
    %32 = vector.load %arg4[%c0_17, %c0_18] : memref<1280x256xbf16, #tpu.memory_space<vmem>>, vector<256x256xbf16>
    %cst_19 = arith.constant dense<0.000000e+00> : vector<40x256xf32>
    %33 = tpu.matmul %31, %32, %cst_19 {dimension_numbers = #tpu.dot_dimension_numbers<[1], [0], [0], [1], [0, 0, 1, 1], [], []>} : vector<40x256xbf16>, vector<256x256xbf16>, vector<40x256xf32> -> vector<40x256xf32>
    %34 = vector.extract_strided_slice %30 {offsets = [1, 0], sizes = [40, 256], strides = [1, 1]} : vector<44x256xbf16> to vector<40x256xbf16>
    %c256_20 = arith.constant 256 : index
    %c0_21 = arith.constant 0 : index
    %35 = vector.load %arg4[%c256_20, %c0_21] : memref<1280x256xbf16, #tpu.memory_space<vmem>>, vector<256x256xbf16>
    %cst_22 = arith.constant dense<0.000000e+00> : vector<40x256xf32>
    %36 = tpu.matmul %34, %35, %cst_22 {dimension_numbers = #tpu.dot_dimension_numbers<[1], [0], [0], [1], [0, 0, 1, 1], [], []>} : vector<40x256xbf16>, vector<256x256xbf16>, vector<40x256xf32> -> vector<40x256xf32>
    %37 = arith.addf %33, %36 : vector<40x256xf32>
    %38 = vector.extract_strided_slice %30 {offsets = [2, 0], sizes = [40, 256], strides = [1, 1]} : vector<44x256xbf16> to vector<40x256xbf16>
    %c512_23 = arith.constant 512 : index
    %c0_24 = arith.constant 0 : index
    %39 = vector.load %arg4[%c512_23, %c0_24] : memref<1280x256xbf16, #tpu.memory_space<vmem>>, vector<256x256xbf16>
    %cst_25 = arith.constant dense<0.000000e+00> : vector<40x256xf32>
    %40 = tpu.matmul %38, %39, %cst_25 {dimension_numbers = #tpu.dot_dimension_numbers<[1], [0], [0], [1], [0, 0, 1, 1], [], []>} : vector<40x256xbf16>, vector<256x256xbf16>, vector<40x256xf32> -> vector<40x256xf32>
    %41 = arith.addf %37, %40 : vector<40x256xf32>
    %42 = vector.extract_strided_slice %30 {offsets = [3, 0], sizes = [40, 256], strides = [1, 1]} : vector<44x256xbf16> to vector<40x256xbf16>
    %c768_26 = arith.constant 768 : index
    %c0_27 = arith.constant 0 : index
    %43 = vector.load %arg4[%c768_26, %c0_27] : memref<1280x256xbf16, #tpu.memory_space<vmem>>, vector<256x256xbf16>
    %cst_28 = arith.constant dense<0.000000e+00> : vector<40x256xf32>
    %44 = tpu.matmul %42, %43, %cst_28 {dimension_numbers = #tpu.dot_dimension_numbers<[1], [0], [0], [1], [0, 0, 1, 1], [], []>} : vector<40x256xbf16>, vector<256x256xbf16>, vector<40x256xf32> -> vector<40x256xf32>
    %45 = arith.addf %41, %44 : vector<40x256xf32>
    %46 = vector.extract_strided_slice %30 {offsets = [4, 0], sizes = [40, 256], strides = [1, 1]} : vector<44x256xbf16> to vector<40x256xbf16>
    %c1024_29 = arith.constant 1024 : index
    %c0_30 = arith.constant 0 : index
    %47 = vector.load %arg4[%c1024_29, %c0_30] : memref<1280x256xbf16, #tpu.memory_space<vmem>>, vector<256x256xbf16>
    %cst_31 = arith.constant dense<0.000000e+00> : vector<40x256xf32>
    %48 = tpu.matmul %46, %47, %cst_31 {dimension_numbers = #tpu.dot_dimension_numbers<[1], [0], [0], [1], [0, 0, 1, 1], [], []>} : vector<40x256xbf16>, vector<256x256xbf16>, vector<40x256xf32> -> vector<40x256xf32>
    %49 = arith.addf %45, %48 : vector<40x256xf32>
    %c0_32 = arith.constant 0 : index
    %c0_33 = arith.constant 0 : index
    %50 = vector.load %arg5[%c0_32, %c0_33] : memref<1x256xf32, #tpu.memory_space<vmem>>, vector<1x256xf32>
    %51 = vector.broadcast %50 : vector<1x256xf32> to vector<40x256xf32>
    %52 = arith.addf %49, %51 : vector<40x256xf32>
    %53 = vector.extract_strided_slice %52 {offsets = [2, 0], sizes = [16, 256], strides = [1, 1]} : vector<40x256xf32> to vector<16x256xf32>
    %c0_34 = arith.constant 0 : index
    %c0_35 = arith.constant 0 : index
    %54 = vector.load %arg1[%c0_34, %c0_35] : memref<32x256xf32, #tpu.memory_space<vmem>>, vector<16x256xf32>
    %55 = arith.addf %53, %54 : vector<16x256xf32>
    %c0_36 = arith.constant 0 : index
    %c0_37 = arith.constant 0 : index
    %56 = vector.load %arg7[%c0_36, %c0_37] : memref<32x256xf32, #tpu.memory_space<vmem>>, vector<16x256xf32>
    tpu.vector_store %arg7[%c0_36, %c0_37], %55 {strides = array<i32>} : memref<32x256xf32, #tpu.memory_space<vmem>>, vector<16x256xf32>,
    %57 = vector.extract_strided_slice %52 {offsets = [22, 0], sizes = [16, 256], strides = [1, 1]} : vector<40x256xf32> to vector<16x256xf32>
    %c16 = arith.constant 16 : index
    %c0_38 = arith.constant 0 : index
    %58 = vector.load %arg1[%c16, %c0_38] : memref<32x256xf32, #tpu.memory_space<vmem>>, vector<16x256xf32>
    %59 = arith.addf %57, %58 : vector<16x256xf32>
    %c16_39 = arith.constant 16 : index
    %c0_40 = arith.constant 0 : index
    %60 = vector.load %arg7[%c16_39, %c0_40] : memref<32x256xf32, #tpu.memory_space<vmem>>, vector<16x256xf32>
    tpu.vector_store %arg7[%c16_39, %c0_40], %59 {strides = array<i32>} : memref<32x256xf32, #tpu.memory_space<vmem>>, vector<16x256xf32>,
    return
  }
}

</mosaic_0001>

<llo_original>
// kernel: tpu_custom_call.1
$region0: #{tpu_custom_call.1}
  #allocation0 [shape = 'u32[]', space=smem, size = 0x4, offset = 0x4, fixed_abs, tag = 'smem constant byte address 0x4 - core index']
  #allocation1 [shape = 'u32[72,128]{1,0:T(1,128)}', space=vmem, size = 0x9000, scoped, tag = 'internal scratch']
  %s0 = inlined_call_operand.hbm [shape: bf16[44,256], index: 0, kind: input, shape index: {}]
  %s1 = inlined_call_operand.hbm [shape: f32[32,256], index: 1, kind: input, shape index: {}]
  %s2 = inlined_call_operand.hbm [shape: bf16[1280,256], index: 2, kind: input, shape index: {}]
  %s3 = inlined_call_operand.vmem [shape: f32[1,256], index: 3, kind: input, shape index: {}]
  %s4 = inlined_call_operand.hbm [shape: bf16[1280,256], index: 4, kind: input, shape index: {}]
  %s5 = inlined_call_operand.vmem [shape: f32[1,256], index: 5, kind: input, shape index: {}]
  %s6 = inlined_call_operand.vmem [shape: f32[40,1], index: 6, kind: input, shape index: {}]
  %s7 = inlined_call_operand.hbm [shape: f32[32,256], index: 7, kind: output, shape index: {}]
  %s8 = sld [smem:[#allocation0]]
  $region54: #{tpu_custom_call.1} parent=0
    _
  %s10 = ssub.s32 1, %s8
  %s11 = scalar_select 0, %s10, %s8
  $region1: #{tpu_custom_call.1} parent=0
    #allocation2 [shape = 'u8[24576]{0}', space=vmem, size = 0x6000, scoped, tag = 'input window, operand 0, single buffered']
    #allocation3 [shape = 's32[1]{0}', space=sflag, size = 0x4, scoped, tag = 'scoped memory for tpu_custom_call.1']
    #allocation4 [shape = 's32[1]{0}', space=sflag, size = 0x4, scoped, tag = 'scoped memory for tpu_custom_call.1']
    #allocation5 [shape = 'u8[32768]{0}', space=vmem, size = 0x8000, scoped, tag = 'input window, operand 1, single buffered']
    #allocation6 [shape = 's32[1]{0}', space=sflag, size = 0x4, scoped, tag = 'scoped memory for tpu_custom_call.1']
    #allocation7 [shape = 'u8[655360]{0}', space=vmem, size = 0xa0000, scoped, tag = 'input window, operand 2, single buffered']
    #allocation8 [shape = 'u8[655360]{0}', space=vmem, size = 0xa0000, scoped, tag = 'input window, operand 4, single buffered']
    #allocation9 [shape = 's32[1]{0}', space=sflag, size = 0x4, scoped, tag = 'scoped memory for tpu_custom_call.1']
    #allocation10 [shape = 'u8[32768]{0}', space=vmem, size = 0x8000, scoped, tag = 'output window, operand 0, single buffered']
    %12 = vsyncpa [#allocation3], 0
    %13 = vsyncpa [#allocation6], 0
    %14 = vsyncpa [#allocation9], 0
    %15 = vsyncpa [#allocation4], 0
    // Predicated region
    $region2: #{tpu_custom_call.1} parent=1 // pred_check
      _
    $region3: #{tpu_custom_call.1} parent=1 // pred_check_branch
      %17 = sbr.rel (0) target = $region5
    $region4: #{tpu_custom_call.1} parent=1 // pred_region
      %19 = vsyncadd [#allocation3], 0
      %s20 = sshll.u32 %s0, 4
      %s21 = int_to_ptr.hbm [resolvable:$true] %s20
      %s22 = sshll.u32 [#allocation2], 4
      %s23 = int_to_ptr.vmem [resolvable:$true] %s22
      %28 = dma.hbm_to_vmem [thread:$0]  %s21, 768, %s23, [#allocation3], 128, 128, 8
    $region5: #{tpu_custom_call.1} parent=1 // pred_fallthru
      _
    // Predicated region
    $region6: #{tpu_custom_call.1} parent=1 // pred_check
      _
    $region7: #{tpu_custom_call.1} parent=1 // pred_check_branch
      %30 = sbr.rel (0) target = $region9
    $region8: #{tpu_custom_call.1} parent=1 // pred_region
      %32 = vsyncadd [#allocation6], 0
      %s33 = sshll.u32 %s1, 4
      %s34 = int_to_ptr.hbm [resolvable:$true] %s33
      %s35 = sshll.u32 [#allocation5], 4
      %s36 = int_to_ptr.vmem [resolvable:$true] %s35
      %41 = dma.hbm_to_vmem [thread:$0]  %s34, 1024, %s36, [#allocation6], 256, 256, 16
    $region9: #{tpu_custom_call.1} parent=1 // pred_fallthru
      _
    // Predicated region
    $region10: #{tpu_custom_call.1} parent=1 // pred_check
      _
    $region11: #{tpu_custom_call.1} parent=1 // pred_check_branch
      %43 = sbr.rel (0) target = $region13
    $region12: #{tpu_custom_call.1} parent=1 // pred_region
      %45 = vsyncadd [#allocation6], 0
      %s46 = sshll.u32 %s2, 4
      %s47 = int_to_ptr.hbm [resolvable:$true] %s46
      %s48 = sshll.u32 [#allocation7], 4
      %s49 = int_to_ptr.vmem [resolvable:$true] %s48
      %54 = dma.hbm_to_vmem [thread:$0]  %s47, 20480, %s49, [#allocation6], 128, 128, 8
    $region13: #{tpu_custom_call.1} parent=1 // pred_fallthru
      _
    // Predicated region
    $region14: #{tpu_custom_call.1} parent=1 // pred_check
      _
    $region15: #{tpu_custom_call.1} parent=1 // pred_check_branch
      %56 = sbr.rel (0) target = $region17
    $region16: #{tpu_custom_call.1} parent=1 // pred_region
      _
    $region17: #{tpu_custom_call.1} parent=1 // pred_fallthru
      _
    // Predicated region
    $region18: #{tpu_custom_call.1} parent=1 // pred_check
      _
    $region19: #{tpu_custom_call.1} parent=1 // pred_check_branch
      %58 = sbr.rel (0) target = $region21
    $region20: #{tpu_custom_call.1} parent=1 // pred_region
      %60 = vsyncadd [#allocation9], 0
      %s61 = sshll.u32 %s4, 4
      %s62 = int_to_ptr.hbm [resolvable:$true] %s61
      %s63 = sshll.u32 [#allocation8], 4
      %s64 = int_to_ptr.vmem [resolvable:$true] %s63
      %69 = dma.hbm_to_vmem [thread:$0]  %s62, 20480, %s64, [#allocation9], 128, 128, 8
    $region21: #{tpu_custom_call.1} parent=1 // pred_fallthru
      _
    // Predicated region
    $region22: #{tpu_custom_call.1} parent=1 // pred_check
      _
    $region23: #{tpu_custom_call.1} parent=1 // pred_check_branch
      %71 = sbr.rel (0) target = $region25
    $region24: #{tpu_custom_call.1} parent=1 // pred_region
      _
    $region25: #{tpu_custom_call.1} parent=1 // pred_fallthru
      _
    // Predicated region
    $region26: #{tpu_custom_call.1} parent=1 // pred_check
      _
    $region27: #{tpu_custom_call.1} parent=1 // pred_check_branch
      %73 = sbr.rel (0) target = $region29
    $region28: #{tpu_custom_call.1} parent=1 // pred_region
      _
    $region29: #{tpu_custom_call.1} parent=1 // pred_fallthru
      _
    // Predicated region
    $region30: #{tpu_custom_call.1} parent=1 // pred_check
      _
    $region31: #{tpu_custom_call.1} parent=1 // pred_check_branch
      %75 = sbr.rel (0) target = $region33
    $region32: #{tpu_custom_call.1} parent=1 // pred_region
      %77 = dma.done [#allocation3], 768
    $region33: #{tpu_custom_call.1} parent=1 // pred_fallthru
      _
    // Predicated region
    $region34: #{tpu_custom_call.1} parent=1 // pred_check
      _
    $region35: #{tpu_custom_call.1} parent=1 // pred_check_branch
      %79 = sbr.rel (0) target = $region37
    $region36: #{tpu_custom_call.1} parent=1 // pred_region
      %81 = dma.done [#allocation6], 1024
    $region37: #{tpu_custom_call.1} parent=1 // pred_fallthru
      _
    // Predicated region
    $region38: #{tpu_custom_call.1} parent=1 // pred_check
      _
    $region39: #{tpu_custom_call.1} parent=1 // pred_check_branch
      %83 = sbr.rel (0) target = $region41
    $region40: #{tpu_custom_call.1} parent=1 // pred_region
      %85 = dma.done [#allocation6], 20480
    $region41: #{tpu_custom_call.1} parent=1 // pred_fallthru
      _
    // Predicated region
    $region42: #{tpu_custom_call.1} parent=1 // pred_check
      _
    $region43: #{tpu_custom_call.1} parent=1 // pred_check_branch
      %87 = sbr.rel (0) target = $region45
    $region44: #{tpu_custom_call.1} parent=1 // pred_region
      %89 = dma.done [#allocation9], 20480
    $region45: #{tpu_custom_call.1} parent=1 // pred_fallthru
      _
    %v91 = vld [vmem:[#allocation2] sm:$0xff]
    %v92 = vld [vmem:[#allocation2 + $0x8] sm:$0xff]
    %v93 = vld [vmem:[#allocation2 + $0x10] sm:$0xff]
    %v94 = vld [vmem:[#allocation2 + $0x18] sm:$0xff]
    %v95 = vld [vmem:[#allocation2 + $0x20] sm:$0xff]
    %v96 = vld [vmem:[#allocation2 + $0x28] sm:$0x33]
    %v97 = vld [vmem:[%s6] sm:$0xff]
    %v98 = vld [vmem:[%s6 + $0x8] sm:$0xff]
    %v99 = vld [vmem:[%s6 + $0x10] sm:$0xff]
    %v100 = vld [vmem:[%s6 + $0x18] sm:$0xff]
    %v101 = vld [vmem:[%s6 + $0x20] sm:$0xff]
    %v102 = vld [vmem:[#allocation7] sm:$0xff]
    %v103 = vld [vmem:[#allocation7 + $0x8] sm:$0xff]
    %v104 = vld [vmem:[#allocation7 + $0x10] sm:$0xff]
    %v105 = vld [vmem:[#allocation7 + $0x18] sm:$0xff]
    %v106 = vld [vmem:[#allocation7 + $0x20] sm:$0xff]
    %v107 = vld [vmem:[#allocation7 + $0x28] sm:$0xff]
    %v108 = vld [vmem:[#allocation7 + $0x30] sm:$0xff]
    %v109 = vld [vmem:[#allocation7 + $0x38] sm:$0xff]
    %v110 = vld [vmem:[#allocation7 + $0x40] sm:$0xff]
    %v111 = vld [vmem:[#allocation7 + $0x48] sm:$0xff]
    %v112 = vld [vmem:[#allocation7 + $0x50] sm:$0xff]
    %v113 = vld [vmem:[#allocation7 + $0x58] sm:$0xff]
    %v114 = vld [vmem:[#allocation7 + $0x60] sm:$0xff]
    %v115 = vld [vmem:[#allocation7 + $0x68] sm:$0xff]
    %v116 = vld [vmem:[#allocation7 + $0x70] sm:$0xff]
    %v117 = vld [vmem:[#allocation7 + $0x78] sm:$0xff]
    %v118 = vld [vmem:[#allocation7 + $0x80] sm:$0xff]
    %v119 = vld [vmem:[#allocation7 + $0x88] sm:$0xff]
    %v120 = vld [vmem:[#allocation7 + $0x90] sm:$0xff]
    %v121 = vld [vmem:[#allocation7 + $0x98] sm:$0xff]
    %v122 = vld [vmem:[#allocation7 + $0xa0] sm:$0xff]
    %v123 = vld [vmem:[#allocation7 + $0xa8] sm:$0xff]
    %v124 = vld [vmem:[#allocation7 + $0xb0] sm:$0xff]
    %v125 = vld [vmem:[#allocation7 + $0xb8] sm:$0xff]
    %v126 = vld [vmem:[#allocation7 + $0xc0] sm:$0xff]
    %v127 = vld [vmem:[#allocation7 + $0xc8] sm:$0xff]
    %v128 = vld [vmem:[#allocation7 + $0xd0] sm:$0xff]
    %v129 = vld [vmem:[#allocation7 + $0xd8] sm:$0xff]
    %v130 = vld [vmem:[#allocation7 + $0xe0] sm:$0xff]
    %v131 = vld [vmem:[#allocation7 + $0xe8] sm:$0xff]
    %v132 = vld [vmem:[#allocation7 + $0xf0] sm:$0xff]
    %v133 = vld [vmem:[#allocation7 + $0xf8] sm:$0xff]
    %v134 = vld [vmem:[#allocation7 + $0x100] sm:$0xff]
    %v135 = vld [vmem:[#allocation7 + $0x108] sm:$0xff]
    %v136 = vld [vmem:[#allocation7 + $0x110] sm:$0xff]
    %v137 = vld [vmem:[#allocation7 + $0x118] sm:$0xff]
    %v138 = vld [vmem:[#allocation7 + $0x120] sm:$0xff]
    %v139 = vld [vmem:[#allocation7 + $0x128] sm:$0xff]
    %v140 = vld [vmem:[#allocation7 + $0x130] sm:$0xff]
    %v141 = vld [vmem:[#allocation7 + $0x138] sm:$0xff]
    %v142 = vld [vmem:[#allocation7 + $0x140] sm:$0xff]
    %v143 = vld [vmem:[#allocation7 + $0x148] sm:$0xff]
    %v144 = vld [vmem:[#allocation7 + $0x150] sm:$0xff]
    %v145 = vld [vmem:[#allocation7 + $0x158] sm:$0xff]
    %v146 = vld [vmem:[#allocation7 + $0x160] sm:$0xff]
    %v147 = vld [vmem:[#allocation7 + $0x168] sm:$0xff]
    %v148 = vld [vmem:[#allocation7 + $0x170] sm:$0xff]
    %v149 = vld [vmem:[#allocation7 + $0x178] sm:$0xff]
    %v150 = vld [vmem:[#allocation7 + $0x180] sm:$0xff]
    %v151 = vld [vmem:[#allocation7 + $0x188] sm:$0xff]
    %v152 = vld [vmem:[#allocation7 + $0x190] sm:$0xff]
    %v153 = vld [vmem:[#allocation7 + $0x198] sm:$0xff]
    %v154 = vld [vmem:[#allocation7 + $0x1a0] sm:$0xff]
    %v155 = vld [vmem:[#allocation7 + $0x1a8] sm:$0xff]
    %v156 = vld [vmem:[#allocation7 + $0x1b0] sm:$0xff]
    %v157 = vld [vmem:[#allocation7 + $0x1b8] sm:$0xff]
    %v158 = vld [vmem:[#allocation7 + $0x1c0] sm:$0xff]
    %v159 = vld [vmem:[#allocation7 + $0x1c8] sm:$0xff]
    %v160 = vld [vmem:[#allocation7 + $0x1d0] sm:$0xff]
    %v161 = vld [vmem:[#allocation7 + $0x1d8] sm:$0xff]
    %v162 = vld [vmem:[#allocation7 + $0x1e0] sm:$0xff]
    %v163 = vld [vmem:[#allocation7 + $0x1e8] sm:$0xff]
    %v164 = vld [vmem:[#allocation7 + $0x1f0] sm:$0xff]
    %v165 = vld [vmem:[#allocation7 + $0x1f8] sm:$0xff]
    %v172 = vunpack.c.l.b16 %v91
    %v173 = vunpack.c.h.b16 %v91
    %v174 = vunpack.c.l.b16 %v92
    %v175 = vunpack.c.h.b16 %v92
    %v176 = vunpack.c.l.b16 %v93
    %v177 = vunpack.c.h.b16 %v93
    %v178 = vunpack.c.l.b16 %v94
    %v179 = vunpack.c.h.b16 %v94
    %v180 = vunpack.c.l.b16 %v95
    %v181 = vunpack.c.h.b16 %v95
    %v182 = vunpack.c.l.b16 %v96
    %v183 = vunpack.c.h.b16 %v96
    %v184 = vpack.c.b16 %v174, %v172
    %v185 = vpack.c.b16 %v175, %v173
    %v186 = vpack.c.b16 %v178, %v176
    %v187 = vpack.c.b16 %v179, %v177
    %v188 = vpack.c.b16 %v182, %v180
    %v189 = vpack.c.b16 %v183, %v181
    %vm190 = vsmask.f32 7424
    %v192 = vshrl.u32 %v184, 16
    %v194 = vshll.u32 %v184, 16
    %v196 = vrot.slane %v194, 1
    %v197 = vor.u32 %v192, %v196
    %v199 = vshll.u32 %v186, 16
    %v201 = vrot.slane %v199, 1
    %v202 = vsel %vm190, %v197, %v201
    %v204 = vshrl.u32 %v185, 16
    %v206 = vshll.u32 %v185, 16
    %v208 = vrot.slane %v206, 1
    %v209 = vor.u32 %v204, %v208
    %v211 = vshll.u32 %v187, 16
    %v213 = vrot.slane %v211, 1
    %v214 = vsel %vm190, %v209, %v213
    %v215 = vshrl.u32 %v186, 16
    %v217 = vor.u32 %v215, %v201
    %v219 = vshll.u32 %v188, 16
    %v221 = vrot.slane %v219, 1
    %v222 = vsel %vm190, %v217, %v221
    %v223 = vshrl.u32 %v187, 16
    %v225 = vor.u32 %v223, %v213
    %v227 = vshll.u32 %v189, 16
    %v229 = vrot.slane %v227, 1
    %v230 = vsel %vm190, %v225, %v229
    %v231 = vshrl.u32 %v188, 16
    %v233 = vor.u32 %v231, %v221
    %v234 = vshrl.u32 %v189, 16
    %v236 = vor.u32 %v234, %v229
    %v275 = vunpack.c.l.b16 %v134
    %v276 = vunpack.c.h.b16 %v134
    %v277 = vunpack.c.l.b16 %v135
    %v278 = vunpack.c.h.b16 %v135
    %v279 = vunpack.c.l.b16 %v136
    %v280 = vunpack.c.h.b16 %v136
    %v281 = vunpack.c.l.b16 %v137
    %v282 = vunpack.c.h.b16 %v137
    %v283 = vunpack.c.l.b16 %v138
    %v284 = vunpack.c.h.b16 %v138
    %v285 = vunpack.c.l.b16 %v139
    %v286 = vunpack.c.h.b16 %v139
    %v287 = vunpack.c.l.b16 %v140
    %v288 = vunpack.c.h.b16 %v140
    %v289 = vunpack.c.l.b16 %v141
    %v290 = vunpack.c.h.b16 %v141
    %v291 = vunpack.c.l.b16 %v142
    %v292 = vunpack.c.h.b16 %v142
    %v293 = vunpack.c.l.b16 %v143
    %v294 = vunpack.c.h.b16 %v143
    %v295 = vunpack.c.l.b16 %v144
    %v296 = vunpack.c.h.b16 %v144
    %v297 = vunpack.c.l.b16 %v145
    %v298 = vunpack.c.h.b16 %v145
    %v299 = vunpack.c.l.b16 %v146
    %v300 = vunpack.c.h.b16 %v146
    %v301 = vunpack.c.l.b16 %v147
    %v302 = vunpack.c.h.b16 %v147
    %v303 = vunpack.c.l.b16 %v148
    %v304 = vunpack.c.h.b16 %v148
    %v305 = vunpack.c.l.b16 %v149
    %v306 = vunpack.c.h.b16 %v149
    %v307 = vunpack.c.l.b16 %v150
    %v308 = vunpack.c.h.b16 %v150
    %v309 = vunpack.c.l.b16 %v151
    %v310 = vunpack.c.h.b16 %v151
    %v311 = vunpack.c.l.b16 %v152
    %v312 = vunpack.c.h.b16 %v152
    %v313 = vunpack.c.l.b16 %v153
    %v314 = vunpack.c.h.b16 %v153
    %v315 = vunpack.c.l.b16 %v154
    %v316 = vunpack.c.h.b16 %v154
    %v317 = vunpack.c.l.b16 %v155
    %v318 = vunpack.c.h.b16 %v155
    %v319 = vunpack.c.l.b16 %v156
    %v320 = vunpack.c.h.b16 %v156
    %v321 = vunpack.c.l.b16 %v157
    %v322 = vunpack.c.h.b16 %v157
    %v323 = vunpack.c.l.b16 %v158
    %v324 = vunpack.c.h.b16 %v158
    %v325 = vunpack.c.l.b16 %v159
    %v326 = vunpack.c.h.b16 %v159
    %v327 = vunpack.c.l.b16 %v160
    %v328 = vunpack.c.h.b16 %v160
    %v329 = vunpack.c.l.b16 %v161
    %v330 = vunpack.c.h.b16 %v161
    %v331 = vunpack.c.l.b16 %v162
    %v332 = vunpack.c.h.b16 %v162
    %v333 = vunpack.c.l.b16 %v163
    %v334 = vunpack.c.h.b16 %v163
    %v335 = vunpack.c.l.b16 %v164
    %v336 = vunpack.c.h.b16 %v164
    %v337 = vunpack.c.l.b16 %v165
    %v338 = vunpack.c.h.b16 %v165
    %v339 = vpack.c.b16 %v277, %v275
    %v340 = vpack.c.b16 %v278, %v276
    %v341 = vpack.c.b16 %v281, %v279
    %v342 = vpack.c.b16 %v282, %v280
    %v343 = vpack.c.b16 %v285, %v283
    %v344 = vpack.c.b16 %v286, %v284
    %v345 = vpack.c.b16 %v289, %v287
    %v346 = vpack.c.b16 %v290, %v288
    %v347 = vpack.c.b16 %v293, %v291
    %v348 = vpack.c.b16 %v294, %v292
    %v349 = vpack.c.b16 %v297, %v295
    %v350 = vpack.c.b16 %v298, %v296
    %v351 = vpack.c.b16 %v301, %v299
    %v352 = vpack.c.b16 %v302, %v300
    %v353 = vpack.c.b16 %v305, %v303
    %v354 = vpack.c.b16 %v306, %v304
    %v355 = vpack.c.b16 %v309, %v307
    %v356 = vpack.c.b16 %v310, %v308
    %v357 = vpack.c.b16 %v313, %v311
    %v358 = vpack.c.b16 %v314, %v312
    %v359 = vpack.c.b16 %v317, %v315
    %v360 = vpack.c.b16 %v318, %v316
    %v361 = vpack.c.b16 %v321, %v319
    %v362 = vpack.c.b16 %v322, %v320
    %v363 = vpack.c.b16 %v325, %v323
    %v364 = vpack.c.b16 %v326, %v324
    %v365 = vpack.c.b16 %v329, %v327
    %v366 = vpack.c.b16 %v330, %v328
    %v367 = vpack.c.b16 %v333, %v331
    %v368 = vpack.c.b16 %v334, %v332
    %v369 = vpack.c.b16 %v337, %v335
    %v370 = vpack.c.b16 %v338, %v336
    %403 = vmatpush.bf16.msra.mxu0 %v353
    %404 = vmatpush.bf16.msra.mxu0 %v351
    %405 = vmatpush.bf16.msra.mxu0 %v349
    %406 = vmatpush.bf16.msra.mxu0 %v347
    %407 = vmatpush.bf16.msra.mxu0 %v345
    %408 = vmatpush.bf16.msra.mxu0 %v343
    %409 = vmatpush.bf16.msra.mxu0 %v341
    %410 = vmatpush.bf16.msra.mxu0 %v339
    %411 = vmatmul.bf16.gmra.mxu0 %v202
    %v412 = vpop.f32.mrf.mxu0
    %v413 = vadd.f32 0.0, %v412
    %v414 = vpop.f32.mrf.mxu0
    %v415 = vadd.f32 0.0, %v414
    %416 = vmatmul.bf16.gmra.mxu0 %v222
    %v417 = vpop.f32.mrf.mxu0
    %v418 = vadd.f32 0.0, %v417
    %v419 = vpop.f32.mrf.mxu0
    %v420 = vadd.f32 0.0, %v419
    %421 = vmatmul.bf16.gmra.mxu0 %v233
    %v422 = vpop.f32.mrf.mxu0
    %v423 = vadd.f32 0.0, %v422
    %v424 = vpop.f32.mrf.mxu0
    %425 = vdwg.mxu0
    %426 = vmatpush.bf16.msra.mxu0 %v369
    %427 = vmatpush.bf16.msra.mxu0 %v367
    %428 = vmatpush.bf16.msra.mxu0 %v365
    %429 = vmatpush.bf16.msra.mxu0 %v363
    %430 = vmatpush.bf16.msra.mxu0 %v361
    %431 = vmatpush.bf16.msra.mxu0 %v359
    %432 = vmatpush.bf16.msra.mxu0 %v357
    %433 = vmatpush.bf16.msra.mxu0 %v355
    %434 = vmatmul.bf16.gmra.mxu0 %v214
    %v435 = vpop.f32.mrf.mxu0
    %v436 = vadd.f32 %v413, %v435
    %v437 = vpop.f32.mrf.mxu0
    %v438 = vadd.f32 %v415, %v437
    %439 = vmatmul.bf16.gmra.mxu0 %v230
    %v440 = vpop.f32.mrf.mxu0
    %v441 = vadd.f32 %v418, %v440
    %v442 = vpop.f32.mrf.mxu0
    %v443 = vadd.f32 %v420, %v442
    %444 = vmatmul.bf16.gmra.mxu0 %v236
    %v445 = vpop.f32.mrf.mxu0
    %v446 = vadd.f32 %v423, %v445
    %v447 = vpop.f32.mrf.mxu0
    %448 = vdwg.mxu0
    %449 = vmatpush.bf16.msra.mxu0 %v354
    %450 = vmatpush.bf16.msra.mxu0 %v352
    %451 = vmatpush.bf16.msra.mxu0 %v350
    %452 = vmatpush.bf16.msra.mxu0 %v348
    %453 = vmatpush.bf16.msra.mxu0 %v346
    %454 = vmatpush.bf16.msra.mxu0 %v344
    %455 = vmatpush.bf16.msra.mxu0 %v342
    %456 = vmatpush.bf16.msra.mxu0 %v340
    %457 = vmatmul.bf16.gmra.mxu0 %v202
    %v458 = vpop.f32.mrf.mxu0
    %v459 = vadd.f32 0.0, %v458
    %v460 = vpop.f32.mrf.mxu0
    %v461 = vadd.f32 0.0, %v460
    %462 = vmatmul.bf16.gmra.mxu0 %v222
    %v463 = vpop.f32.mrf.mxu0
    %v464 = vadd.f32 0.0, %v463
    %v465 = vpop.f32.mrf.mxu0
    %v466 = vadd.f32 0.0, %v465
    %467 = vmatmul.bf16.gmra.mxu0 %v233
    %v468 = vpop.f32.mrf.mxu0
    %v469 = vadd.f32 0.0, %v468
    %v470 = vpop.f32.mrf.mxu0
    %471 = vdwg.mxu0
    %472 = vmatpush.bf16.msra.mxu0 %v370
    %473 = vmatpush.bf16.msra.mxu0 %v368
    %474 = vmatpush.bf16.msra.mxu0 %v366
    %475 = vmatpush.bf16.msra.mxu0 %v364
    %476 = vmatpush.bf16.msra.mxu0 %v362
    %477 = vmatpush.bf16.msra.mxu0 %v360
    %478 = vmatpush.bf16.msra.mxu0 %v358
    %479 = vmatpush.bf16.msra.mxu0 %v356
    %480 = vmatmul.bf16.gmra.mxu0 %v214
    %v481 = vpop.f32.mrf.mxu0
    %v482 = vadd.f32 %v459, %v481
    %v483 = vpop.f32.mrf.mxu0
    %v484 = vadd.f32 %v461, %v483
    %485 = vmatmul.bf16.gmra.mxu0 %v230
    %v486 = vpop.f32.mrf.mxu0
    %v487 = vadd.f32 %v464, %v486
    %v488 = vpop.f32.mrf.mxu0
    %v489 = vadd.f32 %v466, %v488
    %490 = vmatmul.bf16.gmra.mxu0 %v236
    %v491 = vpop.f32.mrf.mxu0
    %v492 = vadd.f32 %v469, %v491
    %v493 = vpop.f32.mrf.mxu0
    %494 = vdwg.mxu0
    %v495 = vpack.c.b16 %v180, %v180
    %v496 = vpack.c.b16 %v181, %v181
    %v535 = vunpack.c.l.b16 %v102
    %v536 = vunpack.c.h.b16 %v102
    %v537 = vunpack.c.l.b16 %v103
    %v538 = vunpack.c.h.b16 %v103
    %v539 = vunpack.c.l.b16 %v104
    %v540 = vunpack.c.h.b16 %v104
    %v541 = vunpack.c.l.b16 %v105
    %v542 = vunpack.c.h.b16 %v105
    %v543 = vunpack.c.l.b16 %v106
    %v544 = vunpack.c.h.b16 %v106
    %v545 = vunpack.c.l.b16 %v107
    %v546 = vunpack.c.h.b16 %v107
    %v547 = vunpack.c.l.b16 %v108
    %v548 = vunpack.c.h.b16 %v108
    %v549 = vunpack.c.l.b16 %v109
    %v550 = vunpack.c.h.b16 %v109
    %v551 = vunpack.c.l.b16 %v110
    %v552 = vunpack.c.h.b16 %v110
    %v553 = vunpack.c.l.b16 %v111
    %v554 = vunpack.c.h.b16 %v111
    %v555 = vunpack.c.l.b16 %v112
    %v556 = vunpack.c.h.b16 %v112
    %v557 = vunpack.c.l.b16 %v113
    %v558 = vunpack.c.h.b16 %v113
    %v559 = vunpack.c.l.b16 %v114
    %v560 = vunpack.c.h.b16 %v114
    %v561 = vunpack.c.l.b16 %v115
    %v562 = vunpack.c.h.b16 %v115
    %v563 = vunpack.c.l.b16 %v116
    %v564 = vunpack.c.h.b16 %v116
    %v565 = vunpack.c.l.b16 %v117
    %v566 = vunpack.c.h.b16 %v117
    %v567 = vunpack.c.l.b16 %v118
    %v568 = vunpack.c.h.b16 %v118
    %v569 = vunpack.c.l.b16 %v119
    %v570 = vunpack.c.h.b16 %v119
    %v571 = vunpack.c.l.b16 %v120
    %v572 = vunpack.c.h.b16 %v120
    %v573 = vunpack.c.l.b16 %v121
    %v574 = vunpack.c.h.b16 %v121
    %v575 = vunpack.c.l.b16 %v122
    %v576 = vunpack.c.h.b16 %v122
    %v577 = vunpack.c.l.b16 %v123
    %v578 = vunpack.c.h.b16 %v123
    %v579 = vunpack.c.l.b16 %v124
    %v580 = vunpack.c.h.b16 %v124
    %v581 = vunpack.c.l.b16 %v125
    %v582 = vunpack.c.h.b16 %v125
    %v583 = vunpack.c.l.b16 %v126
    %v584 = vunpack.c.h.b16 %v126
    %v585 = vunpack.c.l.b16 %v127
    %v586 = vunpack.c.h.b16 %v127
    %v587 = vunpack.c.l.b16 %v128
    %v588 = vunpack.c.h.b16 %v128
    %v589 = vunpack.c.l.b16 %v129
    %v590 = vunpack.c.h.b16 %v129
    %v591 = vunpack.c.l.b16 %v130
    %v592 = vunpack.c.h.b16 %v130
    %v593 = vunpack.c.l.b16 %v131
    %v594 = vunpack.c.h.b16 %v131
    %v595 = vunpack.c.l.b16 %v132
    %v596 = vunpack.c.h.b16 %v132
    %v597 = vunpack.c.l.b16 %v133
    %v598 = vunpack.c.h.b16 %v133
    %v599 = vpack.c.b16 %v537, %v535
    %v600 = vpack.c.b16 %v538, %v536
    %v601 = vpack.c.b16 %v541, %v539
    %v602 = vpack.c.b16 %v542, %v540
    %v603 = vpack.c.b16 %v545, %v543
    %v604 = vpack.c.b16 %v546, %v544
    %v605 = vpack.c.b16 %v549, %v547
    %v606 = vpack.c.b16 %v550, %v548
    %v607 = vpack.c.b16 %v553, %v551
    %v608 = vpack.c.b16 %v554, %v552
    %v609 = vpack.c.b16 %v557, %v555
    %v610 = vpack.c.b16 %v558, %v556
    %v611 = vpack.c.b16 %v561, %v559
    %v612 = vpack.c.b16 %v562, %v560
    %v613 = vpack.c.b16 %v565, %v563
    %v614 = vpack.c.b16 %v566, %v564
    %v615 = vpack.c.b16 %v569, %v567
    %v616 = vpack.c.b16 %v570, %v568
    %v617 = vpack.c.b16 %v573, %v571
    %v618 = vpack.c.b16 %v574, %v572
    %v619 = vpack.c.b16 %v577, %v575
    %v620 = vpack.c.b16 %v578, %v576
    %v621 = vpack.c.b16 %v581, %v579
    %v622 = vpack.c.b16 %v582, %v580
    %v623 = vpack.c.b16 %v585, %v583
    %v624 = vpack.c.b16 %v586, %v584
    %v625 = vpack.c.b16 %v589, %v587
    %v626 = vpack.c.b16 %v590, %v588
    %v627 = vpack.c.b16 %v593, %v591
    %v628 = vpack.c.b16 %v594, %v592
    %v629 = vpack.c.b16 %v597, %v595
    %v630 = vpack.c.b16 %v598, %v596
    %663 = vmatpush.bf16.msra.mxu0 %v613
    %664 = vmatpush.bf16.msra.mxu0 %v611
    %665 = vmatpush.bf16.msra.mxu0 %v609
    %666 = vmatpush.bf16.msra.mxu0 %v607
    %667 = vmatpush.bf16.msra.mxu0 %v605
    %668 = vmatpush.bf16.msra.mxu0 %v603
    %669 = vmatpush.bf16.msra.mxu0 %v601
    %670 = vmatpush.bf16.msra.mxu0 %v599
    %671 = vmatmul.bf16.gmra.mxu0 %v184
    %v672 = vpop.f32.mrf.mxu0
    %v673 = vadd.f32 %v436, %v672
    %v674 = vpop.f32.mrf.mxu0
    %v675 = vadd.f32 %v438, %v674
    %676 = vmatmul.bf16.gmra.mxu0 %v186
    %v677 = vpop.f32.mrf.mxu0
    %v678 = vadd.f32 %v441, %v677
    %v679 = vpop.f32.mrf.mxu0
    %v680 = vadd.f32 %v443, %v679
    %681 = vmatmul.bf16.gmra.mxu0 %v495
    %v682 = vpop.f32.mrf.mxu0
    %v683 = vadd.f32 %v446, %v682
    %v684 = vpop.f32.mrf.mxu0
    %685 = vdwg.mxu0
    %686 = vmatpush.bf16.msra.mxu0 %v629
    %687 = vmatpush.bf16.msra.mxu0 %v627
    %688 = vmatpush.bf16.msra.mxu0 %v625
    %689 = vmatpush.bf16.msra.mxu0 %v623
    %690 = vmatpush.bf16.msra.mxu0 %v621
    %691 = vmatpush.bf16.msra.mxu0 %v619
    %692 = vmatpush.bf16.msra.mxu0 %v617
    %693 = vmatpush.bf16.msra.mxu0 %v615
    %694 = vmatmul.bf16.gmra.mxu0 %v185
    %v695 = vpop.f32.mrf.mxu0
    %v696 = vadd.f32 %v673, %v695
    %v697 = vpop.f32.mrf.mxu0
    %v698 = vadd.f32 %v675, %v697
    %699 = vmatmul.bf16.gmra.mxu0 %v187
    %v700 = vpop.f32.mrf.mxu0
    %v701 = vadd.f32 %v678, %v700
    %v702 = vpop.f32.mrf.mxu0
    %v703 = vadd.f32 %v680, %v702
    %704 = vmatmul.bf16.gmra.mxu0 %v496
    %v705 = vpop.f32.mrf.mxu0
    %v706 = vadd.f32 %v683, %v705
    %v707 = vpop.f32.mrf.mxu0
    %708 = vdwg.mxu0
    %709 = vmatpush.bf16.msra.mxu0 %v614
    %710 = vmatpush.bf16.msra.mxu0 %v612
    %711 = vmatpush.bf16.msra.mxu0 %v610
    %712 = vmatpush.bf16.msra.mxu0 %v608
    %713 = vmatpush.bf16.msra.mxu0 %v606
    %714 = vmatpush.bf16.msra.mxu0 %v604
    %715 = vmatpush.bf16.msra.mxu0 %v602
    %716 = vmatpush.bf16.msra.mxu0 %v600
    %717 = vmatmul.bf16.gmra.mxu0 %v184
    %v718 = vpop.f32.mrf.mxu0
    %v719 = vadd.f32 %v482, %v718
    %v720 = vpop.f32.mrf.mxu0
    %v721 = vadd.f32 %v484, %v720
    %722 = vmatmul.bf16.gmra.mxu0 %v186
    %v723 = vpop.f32.mrf.mxu0
    %v724 = vadd.f32 %v487, %v723
    %v725 = vpop.f32.mrf.mxu0
    %v726 = vadd.f32 %v489, %v725
    %727 = vmatmul.bf16.gmra.mxu0 %v495
    %v728 = vpop.f32.mrf.mxu0
    %v729 = vadd.f32 %v492, %v728
    %v730 = vpop.f32.mrf.mxu0
    %731 = vdwg.mxu0
    %732 = vmatpush.bf16.msra.mxu0 %v630
    %733 = vmatpush.bf16.msra.mxu0 %v628
    %734 = vmatpush.bf16.msra.mxu0 %v626
    %735 = vmatpush.bf16.msra.mxu0 %v624
    %736 = vmatpush.bf16.msra.mxu0 %v622
    %737 = vmatpush.bf16.msra.mxu0 %v620
    %738 = vmatpush.bf16.msra.mxu0 %v618
    %739 = vmatpush.bf16.msra.mxu0 %v616
    %740 = vmatmul.bf16.gmra.mxu0 %v185
    %v741 = vpop.f32.mrf.mxu0
    %v742 = vadd.f32 %v719, %v741
    %v743 = vpop.f32.mrf.mxu0
    %v744 = vadd.f32 %v721, %v743
    %745 = vmatmul.bf16.gmra.mxu0 %v187
    %v746 = vpop.f32.mrf.mxu0
    %v747 = vadd.f32 %v724, %v746
    %v748 = vpop.f32.mrf.mxu0
    %v749 = vadd.f32 %v726, %v748
    %750 = vmatmul.bf16.gmra.mxu0 %v496
    %v751 = vpop.f32.mrf.mxu0
    %v752 = vadd.f32 %v729, %v751
    %v753 = vpop.f32.mrf.mxu0
    %754 = vdwg.mxu0
    %v755 = vld [vmem:[#allocation7 + $0x200] sm:$0xff]
    %v756 = vld [vmem:[#allocation7 + $0x208] sm:$0xff]
    %v757 = vld [vmem:[#allocation7 + $0x210] sm:$0xff]
    %v758 = vld [vmem:[#allocation7 + $0x218] sm:$0xff]
    %v759 = vld [vmem:[#allocation7 + $0x220] sm:$0xff]
    %v760 = vld [vmem:[#allocation7 + $0x228] sm:$0xff]
    %v761 = vld [vmem:[#allocation7 + $0x230] sm:$0xff]
    %v762 = vld [vmem:[#allocation7 + $0x238] sm:$0xff]
    %v763 = vld [vmem:[#allocation7 + $0x240] sm:$0xff]
    %v764 = vld [vmem:[#allocation7 + $0x248] sm:$0xff]
    %v765 = vld [vmem:[#allocation7 + $0x250] sm:$0xff]
    %v766 = vld [vmem:[#allocation7 + $0x258] sm:$0xff]
    %v767 = vld [vmem:[#allocation7 + $0x260] sm:$0xff]
    %v768 = vld [vmem:[#allocation7 + $0x268] sm:$0xff]
    %v769 = vld [vmem:[#allocation7 + $0x270] sm:$0xff]
    %v770 = vld [vmem:[#allocation7 + $0x278] sm:$0xff]
    %v771 = vld [vmem:[#allocation7 + $0x280] sm:$0xff]
    %v772 = vld [vmem:[#allocation7 + $0x288] sm:$0xff]
    %v773 = vld [vmem:[#allocation7 + $0x290] sm:$0xff]
    %v774 = vld [vmem:[#allocation7 + $0x298] sm:$0xff]
    %v775 = vld [vmem:[#allocation7 + $0x2a0] sm:$0xff]
    %v776 = vld [vmem:[#allocation7 + $0x2a8] sm:$0xff]
    %v777 = vld [vmem:[#allocation7 + $0x2b0] sm:$0xff]
    %v778 = vld [vmem:[#allocation7 + $0x2b8] sm:$0xff]
    %v779 = vld [vmem:[#allocation7 + $0x2c0] sm:$0xff]
    %v780 = vld [vmem:[#allocation7 + $0x2c8] sm:$0xff]
    %v781 = vld [vmem:[#allocation7 + $0x2d0] sm:$0xff]
    %v782 = vld [vmem:[#allocation7 + $0x2d8] sm:$0xff]
    %v783 = vld [vmem:[#allocation7 + $0x2e0] sm:$0xff]
    %v784 = vld [vmem:[#allocation7 + $0x2e8] sm:$0xff]
    %v785 = vld [vmem:[#allocation7 + $0x2f0] sm:$0xff]
    %v786 = vld [vmem:[#allocation7 + $0x2f8] sm:$0xff]
    %vm787 = vcmask 1046528
    %v788 = vrot.slane %v184, 1
    %v789 = vrot.slane %v186, 1
    %v790 = vsel %vm787, %v788, %v789
    %v791 = vrot.slane %v185, 1
    %v792 = vrot.slane %v187, 1
    %v793 = vsel %vm787, %v791, %v792
    %v794 = vrot.slane %v188, 1
    %v795 = vsel %vm787, %v789, %v794
    %v796 = vrot.slane %v189, 1
    %v797 = vsel %vm787, %v792, %v796
    %v836 = vunpack.c.l.b16 %v755
    %v837 = vunpack.c.h.b16 %v755
    %v838 = vunpack.c.l.b16 %v756
    %v839 = vunpack.c.h.b16 %v756
    %v840 = vunpack.c.l.b16 %v757
    %v841 = vunpack.c.h.b16 %v757
    %v842 = vunpack.c.l.b16 %v758
    %v843 = vunpack.c.h.b16 %v758
    %v844 = vunpack.c.l.b16 %v759
    %v845 = vunpack.c.h.b16 %v759
    %v846 = vunpack.c.l.b16 %v760
    %v847 = vunpack.c.h.b16 %v760
    %v848 = vunpack.c.l.b16 %v761
    %v849 = vunpack.c.h.b16 %v761
    %v850 = vunpack.c.l.b16 %v762
    %v851 = vunpack.c.h.b16 %v762
    %v852 = vunpack.c.l.b16 %v763
    %v853 = vunpack.c.h.b16 %v763
    %v854 = vunpack.c.l.b16 %v764
    %v855 = vunpack.c.h.b16 %v764
    %v856 = vunpack.c.l.b16 %v765
    %v857 = vunpack.c.h.b16 %v765
    %v858 = vunpack.c.l.b16 %v766
    %v859 = vunpack.c.h.b16 %v766
    %v860 = vunpack.c.l.b16 %v767
    %v861 = vunpack.c.h.b16 %v767
    %v862 = vunpack.c.l.b16 %v768
    %v863 = vunpack.c.h.b16 %v768
    %v864 = vunpack.c.l.b16 %v769
    %v865 = vunpack.c.h.b16 %v769
    %v866 = vunpack.c.l.b16 %v770
    %v867 = vunpack.c.h.b16 %v770
    %v868 = vunpack.c.l.b16 %v771
    %v869 = vunpack.c.h.b16 %v771
    %v870 = vunpack.c.l.b16 %v772
    %v871 = vunpack.c.h.b16 %v772
    %v872 = vunpack.c.l.b16 %v773
    %v873 = vunpack.c.h.b16 %v773
    %v874 = vunpack.c.l.b16 %v774
    %v875 = vunpack.c.h.b16 %v774
    %v876 = vunpack.c.l.b16 %v775
    %v877 = vunpack.c.h.b16 %v775
    %v878 = vunpack.c.l.b16 %v776
    %v879 = vunpack.c.h.b16 %v776
    %v880 = vunpack.c.l.b16 %v777
    %v881 = vunpack.c.h.b16 %v777
    %v882 = vunpack.c.l.b16 %v778
    %v883 = vunpack.c.h.b16 %v778
    %v884 = vunpack.c.l.b16 %v779
    %v885 = vunpack.c.h.b16 %v779
    %v886 = vunpack.c.l.b16 %v780
    %v887 = vunpack.c.h.b16 %v780
    %v888 = vunpack.c.l.b16 %v781
    %v889 = vunpack.c.h.b16 %v781
    %v890 = vunpack.c.l.b16 %v782
    %v891 = vunpack.c.h.b16 %v782
    %v892 = vunpack.c.l.b16 %v783
    %v893 = vunpack.c.h.b16 %v783
    %v894 = vunpack.c.l.b16 %v784
    %v895 = vunpack.c.h.b16 %v784
    %v896 = vunpack.c.l.b16 %v785
    %v897 = vunpack.c.h.b16 %v785
    %v898 = vunpack.c.l.b16 %v786
    %v899 = vunpack.c.h.b16 %v786
    %v900 = vpack.c.b16 %v838, %v836
    %v901 = vpack.c.b16 %v839, %v837
    %v902 = vpack.c.b16 %v842, %v840
    %v903 = vpack.c.b16 %v843, %v841
    %v904 = vpack.c.b16 %v846, %v844
    %v905 = vpack.c.b16 %v847, %v845
    %v906 = vpack.c.b16 %v850, %v848
    %v907 = vpack.c.b16 %v851, %v849
    %v908 = vpack.c.b16 %v854, %v852
    %v909 = vpack.c.b16 %v855, %v853
    %v910 = vpack.c.b16 %v858, %v856
    %v911 = vpack.c.b16 %v859, %v857
    %v912 = vpack.c.b16 %v862, %v860
    %v913 = vpack.c.b16 %v863, %v861
    %v914 = vpack.c.b16 %v866, %v864
    %v915 = vpack.c.b16 %v867, %v865
    %v916 = vpack.c.b16 %v870, %v868
    %v917 = vpack.c.b16 %v871, %v869
    %v918 = vpack.c.b16 %v874, %v872
    %v919 = vpack.c.b16 %v875, %v873
    %v920 = vpack.c.b16 %v878, %v876
    %v921 = vpack.c.b16 %v879, %v877
    %v922 = vpack.c.b16 %v882, %v880
    %v923 = vpack.c.b16 %v883, %v881
    %v924 = vpack.c.b16 %v886, %v884
    %v925 = vpack.c.b16 %v887, %v885
    %v926 = vpack.c.b16 %v890, %v888
    %v927 = vpack.c.b16 %v891, %v889
    %v928 = vpack.c.b16 %v894, %v892
    %v929 = vpack.c.b16 %v895, %v893
    %v930 = vpack.c.b16 %v898, %v896
    %v931 = vpack.c.b16 %v899, %v897
    %964 = vmatpush.bf16.msra.mxu0 %v914
    %965 = vmatpush.bf16.msra.mxu0 %v912
    %966 = vmatpush.bf16.msra.mxu0 %v910
    %967 = vmatpush.bf16.msra.mxu0 %v908
    %968 = vmatpush.bf16.msra.mxu0 %v906
    %969 = vmatpush.bf16.msra.mxu0 %v904
    %970 = vmatpush.bf16.msra.mxu0 %v902
    %971 = vmatpush.bf16.msra.mxu0 %v900
    %972 = vmatmul.bf16.gmra.mxu0 %v790
    %v973 = vpop.f32.mrf.mxu0
    %v974 = vadd.f32 0.0, %v973
    %v975 = vpop.f32.mrf.mxu0
    %v976 = vadd.f32 0.0, %v975
    %977 = vmatmul.bf16.gmra.mxu0 %v795
    %v978 = vpop.f32.mrf.mxu0
    %v979 = vadd.f32 0.0, %v978
    %v980 = vpop.f32.mrf.mxu0
    %v981 = vadd.f32 0.0, %v980
    %982 = vmatmul.bf16.gmra.mxu0 %v794
    %v983 = vpop.f32.mrf.mxu0
    %v984 = vadd.f32 0.0, %v983
    %v985 = vpop.f32.mrf.mxu0
    %986 = vdwg.mxu0
    %987 = vmatpush.bf16.msra.mxu0 %v930
    %988 = vmatpush.bf16.msra.mxu0 %v928
    %989 = vmatpush.bf16.msra.mxu0 %v926
    %990 = vmatpush.bf16.msra.mxu0 %v924
    %991 = vmatpush.bf16.msra.mxu0 %v922
    %992 = vmatpush.bf16.msra.mxu0 %v920
    %993 = vmatpush.bf16.msra.mxu0 %v918
    %994 = vmatpush.bf16.msra.mxu0 %v916
    %995 = vmatmul.bf16.gmra.mxu0 %v793
    %v996 = vpop.f32.mrf.mxu0
    %v997 = vadd.f32 %v974, %v996
    %v998 = vpop.f32.mrf.mxu0
    %v999 = vadd.f32 %v976, %v998
    %1000 = vmatmul.bf16.gmra.mxu0 %v797
    %v1001 = vpop.f32.mrf.mxu0
    %v1002 = vadd.f32 %v979, %v1001
    %v1003 = vpop.f32.mrf.mxu0
    %v1004 = vadd.f32 %v981, %v1003
    %1005 = vmatmul.bf16.gmra.mxu0 %v796
    %v1006 = vpop.f32.mrf.mxu0
    %v1007 = vadd.f32 %v984, %v1006
    %v1008 = vpop.f32.mrf.mxu0
    %1009 = vdwg.mxu0
    %1010 = vmatpush.bf16.msra.mxu0 %v915
    %1011 = vmatpush.bf16.msra.mxu0 %v913
    %1012 = vmatpush.bf16.msra.mxu0 %v911
    %1013 = vmatpush.bf16.msra.mxu0 %v909
    %1014 = vmatpush.bf16.msra.mxu0 %v907
    %1015 = vmatpush.bf16.msra.mxu0 %v905
    %1016 = vmatpush.bf16.msra.mxu0 %v903
    %1017 = vmatpush.bf16.msra.mxu0 %v901
    %1018 = vmatmul.bf16.gmra.mxu0 %v790
    %v1019 = vpop.f32.mrf.mxu0
    %v1020 = vadd.f32 0.0, %v1019
    %v1021 = vpop.f32.mrf.mxu0
    %v1022 = vadd.f32 0.0, %v1021
    %1023 = vmatmul.bf16.gmra.mxu0 %v795
    %v1024 = vpop.f32.mrf.mxu0
    %v1025 = vadd.f32 0.0, %v1024
    %v1026 = vpop.f32.mrf.mxu0
    %v1027 = vadd.f32 0.0, %v1026
    %1028 = vmatmul.bf16.gmra.mxu0 %v794
    %v1029 = vpop.f32.mrf.mxu0
    %v1030 = vadd.f32 0.0, %v1029
    %v1031 = vpop.f32.mrf.mxu0
    %1032 = vdwg.mxu0
    %1033 = vmatpush.bf16.msra.mxu0 %v931
    %1034 = vmatpush.bf16.msra.mxu0 %v929
    %1035 = vmatpush.bf16.msra.mxu0 %v927
    %1036 = vmatpush.bf16.msra.mxu0 %v925
    %1037 = vmatpush.bf16.msra.mxu0 %v923
    %1038 = vmatpush.bf16.msra.mxu0 %v921
    %1039 = vmatpush.bf16.msra.mxu0 %v919
    %1040 = vmatpush.bf16.msra.mxu0 %v917
    %1041 = vmatmul.bf16.gmra.mxu0 %v793
    %v1042 = vpop.f32.mrf.mxu0
    %v1043 = vadd.f32 %v1020, %v1042
    %v1044 = vpop.f32.mrf.mxu0
    %v1045 = vadd.f32 %v1022, %v1044
    %1046 = vmatmul.bf16.gmra.mxu0 %v797
    %v1047 = vpop.f32.mrf.mxu0
    %v1048 = vadd.f32 %v1025, %v1047
    %v1049 = vpop.f32.mrf.mxu0
    %v1050 = vadd.f32 %v1027, %v1049
    %1051 = vmatmul.bf16.gmra.mxu0 %v796
    %v1052 = vpop.f32.mrf.mxu0
    %v1053 = vadd.f32 %v1030, %v1052
    %v1054 = vpop.f32.mrf.mxu0
    %1055 = vdwg.mxu0
    %v1056 = vadd.f32 %v696, %v997
    %v1057 = vadd.f32 %v742, %v1043
    %v1058 = vadd.f32 %v698, %v999
    %v1059 = vadd.f32 %v744, %v1045
    %v1060 = vadd.f32 %v701, %v1002
    %v1061 = vadd.f32 %v747, %v1048
    %v1062 = vadd.f32 %v703, %v1004
    %v1063 = vadd.f32 %v749, %v1050
    %v1064 = vadd.f32 %v706, %v1007
    %v1065 = vadd.f32 %v752, %v1053
    %v1066 = vld [vmem:[#allocation7 + $0x300] sm:$0xff]
    %v1067 = vld [vmem:[#allocation7 + $0x308] sm:$0xff]
    %v1068 = vld [vmem:[#allocation7 + $0x310] sm:$0xff]
    %v1069 = vld [vmem:[#allocation7 + $0x318] sm:$0xff]
    %v1070 = vld [vmem:[#allocation7 + $0x320] sm:$0xff]
    %v1071 = vld [vmem:[#allocation7 + $0x328] sm:$0xff]
    %v1072 = vld [vmem:[#allocation7 + $0x330] sm:$0xff]
    %v1073 = vld [vmem:[#allocation7 + $0x338] sm:$0xff]
    %v1074 = vld [vmem:[#allocation7 + $0x340] sm:$0xff]
    %v1075 = vld [vmem:[#allocation7 + $0x348] sm:$0xff]
    %v1076 = vld [vmem:[#allocation7 + $0x350] sm:$0xff]
    %v1077 = vld [vmem:[#allocation7 + $0x358] sm:$0xff]
    %v1078 = vld [vmem:[#allocation7 + $0x360] sm:$0xff]
    %v1079 = vld [vmem:[#allocation7 + $0x368] sm:$0xff]
    %v1080 = vld [vmem:[#allocation7 + $0x370] sm:$0xff]
    %v1081 = vld [vmem:[#allocation7 + $0x378] sm:$0xff]
    %v1082 = vld [vmem:[#allocation7 + $0x380] sm:$0xff]
    %v1083 = vld [vmem:[#allocation7 + $0x388] sm:$0xff]
    %v1084 = vld [vmem:[#allocation7 + $0x390] sm:$0xff]
    %v1085 = vld [vmem:[#allocation7 + $0x398] sm:$0xff]
    %v1086 = vld [vmem:[#allocation7 + $0x3a0] sm:$0xff]
    %v1087 = vld [vmem:[#allocation7 + $0x3a8] sm:$0xff]
    %v1088 = vld [vmem:[#allocation7 + $0x3b0] sm:$0xff]
    %v1089 = vld [vmem:[#allocation7 + $0x3b8] sm:$0xff]
    %v1090 = vld [vmem:[#allocation7 + $0x3c0] sm:$0xff]
    %v1091 = vld [vmem:[#allocation7 + $0x3c8] sm:$0xff]
    %v1092 = vld [vmem:[#allocation7 + $0x3d0] sm:$0xff]
    %v1093 = vld [vmem:[#allocation7 + $0x3d8] sm:$0xff]
    %v1094 = vld [vmem:[#allocation7 + $0x3e0] sm:$0xff]
    %v1095 = vld [vmem:[#allocation7 + $0x3e8] sm:$0xff]
    %v1096 = vld [vmem:[#allocation7 + $0x3f0] sm:$0xff]
    %v1097 = vld [vmem:[#allocation7 + $0x3f8] sm:$0xff]
    %vm1098 = vsmask.f32 6400
    %v1099 = vrot.slane %v192, 1
    %v1100 = vrot.slane %v194, 2
    %v1101 = vor.u32 %v1099, %v1100
    %v1102 = vrot.slane %v215, 1
    %v1103 = vrot.slane %v199, 2
    %v1104 = vor.u32 %v1102, %v1103
    %v1105 = vsel %vm1098, %v1101, %v1104
    %v1106 = vrot.slane %v204, 1
    %v1107 = vrot.slane %v206, 2
    %v1108 = vor.u32 %v1106, %v1107
    %v1109 = vrot.slane %v223, 1
    %v1110 = vrot.slane %v211, 2
    %v1111 = vor.u32 %v1109, %v1110
    %v1112 = vsel %vm1098, %v1108, %v1111
    %v1113 = vrot.slane %v231, 1
    %v1114 = vrot.slane %v219, 2
    %v1115 = vor.u32 %v1113, %v1114
    %v1116 = vsel %vm1098, %v1104, %v1115
    %v1117 = vrot.slane %v234, 1
    %v1118 = vrot.slane %v227, 2
    %v1119 = vor.u32 %v1117, %v1118
    %v1120 = vsel %vm1098, %v1111, %v1119
    %v1159 = vunpack.c.l.b16 %v1066
    %v1160 = vunpack.c.h.b16 %v1066
    %v1161 = vunpack.c.l.b16 %v1067
    %v1162 = vunpack.c.h.b16 %v1067
    %v1163 = vunpack.c.l.b16 %v1068
    %v1164 = vunpack.c.h.b16 %v1068
    %v1165 = vunpack.c.l.b16 %v1069
    %v1166 = vunpack.c.h.b16 %v1069
    %v1167 = vunpack.c.l.b16 %v1070
    %v1168 = vunpack.c.h.b16 %v1070
    %v1169 = vunpack.c.l.b16 %v1071
    %v1170 = vunpack.c.h.b16 %v1071
    %v1171 = vunpack.c.l.b16 %v1072
    %v1172 = vunpack.c.h.b16 %v1072
    %v1173 = vunpack.c.l.b16 %v1073
    %v1174 = vunpack.c.h.b16 %v1073
    %v1175 = vunpack.c.l.b16 %v1074
    %v1176 = vunpack.c.h.b16 %v1074
    %v1177 = vunpack.c.l.b16 %v1075
    %v1178 = vunpack.c.h.b16 %v1075
    %v1179 = vunpack.c.l.b16 %v1076
    %v1180 = vunpack.c.h.b16 %v1076
    %v1181 = vunpack.c.l.b16 %v1077
    %v1182 = vunpack.c.h.b16 %v1077
    %v1183 = vunpack.c.l.b16 %v1078
    %v1184 = vunpack.c.h.b16 %v1078
    %v1185 = vunpack.c.l.b16 %v1079
    %v1186 = vunpack.c.h.b16 %v1079
    %v1187 = vunpack.c.l.b16 %v1080
    %v1188 = vunpack.c.h.b16 %v1080
    %v1189 = vunpack.c.l.b16 %v1081
    %v1190 = vunpack.c.h.b16 %v1081
    %v1191 = vunpack.c.l.b16 %v1082
    %v1192 = vunpack.c.h.b16 %v1082
    %v1193 = vunpack.c.l.b16 %v1083
    %v1194 = vunpack.c.h.b16 %v1083
    %v1195 = vunpack.c.l.b16 %v1084
    %v1196 = vunpack.c.h.b16 %v1084
    %v1197 = vunpack.c.l.b16 %v1085
    %v1198 = vunpack.c.h.b16 %v1085
    %v1199 = vunpack.c.l.b16 %v1086
    %v1200 = vunpack.c.h.b16 %v1086
    %v1201 = vunpack.c.l.b16 %v1087
    %v1202 = vunpack.c.h.b16 %v1087
    %v1203 = vunpack.c.l.b16 %v1088
    %v1204 = vunpack.c.h.b16 %v1088
    %v1205 = vunpack.c.l.b16 %v1089
    %v1206 = vunpack.c.h.b16 %v1089
    %v1207 = vunpack.c.l.b16 %v1090
    %v1208 = vunpack.c.h.b16 %v1090
    %v1209 = vunpack.c.l.b16 %v1091
    %v1210 = vunpack.c.h.b16 %v1091
    %v1211 = vunpack.c.l.b16 %v1092
    %v1212 = vunpack.c.h.b16 %v1092
    %v1213 = vunpack.c.l.b16 %v1093
    %v1214 = vunpack.c.h.b16 %v1093
    %v1215 = vunpack.c.l.b16 %v1094
    %v1216 = vunpack.c.h.b16 %v1094
    %v1217 = vunpack.c.l.b16 %v1095
    %v1218 = vunpack.c.h.b16 %v1095
    %v1219 = vunpack.c.l.b16 %v1096
    %v1220 = vunpack.c.h.b16 %v1096
    %v1221 = vunpack.c.l.b16 %v1097
    %v1222 = vunpack.c.h.b16 %v1097
    %v1223 = vpack.c.b16 %v1161, %v1159
    %v1224 = vpack.c.b16 %v1162, %v1160
    %v1225 = vpack.c.b16 %v1165, %v1163
    %v1226 = vpack.c.b16 %v1166, %v1164
    %v1227 = vpack.c.b16 %v1169, %v1167
    %v1228 = vpack.c.b16 %v1170, %v1168
    %v1229 = vpack.c.b16 %v1173, %v1171
    %v1230 = vpack.c.b16 %v1174, %v1172
    %v1231 = vpack.c.b16 %v1177, %v1175
    %v1232 = vpack.c.b16 %v1178, %v1176
    %v1233 = vpack.c.b16 %v1181, %v1179
    %v1234 = vpack.c.b16 %v1182, %v1180
    %v1235 = vpack.c.b16 %v1185, %v1183
    %v1236 = vpack.c.b16 %v1186, %v1184
    %v1237 = vpack.c.b16 %v1189, %v1187
    %v1238 = vpack.c.b16 %v1190, %v1188
    %v1239 = vpack.c.b16 %v1193, %v1191
    %v1240 = vpack.c.b16 %v1194, %v1192
    %v1241 = vpack.c.b16 %v1197, %v1195
    %v1242 = vpack.c.b16 %v1198, %v1196
    %v1243 = vpack.c.b16 %v1201, %v1199
    %v1244 = vpack.c.b16 %v1202, %v1200
    %v1245 = vpack.c.b16 %v1205, %v1203
    %v1246 = vpack.c.b16 %v1206, %v1204
    %v1247 = vpack.c.b16 %v1209, %v1207
    %v1248 = vpack.c.b16 %v1210, %v1208
    %v1249 = vpack.c.b16 %v1213, %v1211
    %v1250 = vpack.c.b16 %v1214, %v1212
    %v1251 = vpack.c.b16 %v1217, %v1215
    %v1252 = vpack.c.b16 %v1218, %v1216
    %v1253 = vpack.c.b16 %v1221, %v1219
    %v1254 = vpack.c.b16 %v1222, %v1220
    %1287 = vmatpush.bf16.msra.mxu0 %v1237
    %1288 = vmatpush.bf16.msra.mxu0 %v1235
    %1289 = vmatpush.bf16.msra.mxu0 %v1233
    %1290 = vmatpush.bf16.msra.mxu0 %v1231
    %1291 = vmatpush.bf16.msra.mxu0 %v1229
    %1292 = vmatpush.bf16.msra.mxu0 %v1227
    %1293 = vmatpush.bf16.msra.mxu0 %v1225
    %1294 = vmatpush.bf16.msra.mxu0 %v1223
    %1295 = vmatmul.bf16.gmra.mxu0 %v1105
    %v1296 = vpop.f32.mrf.mxu0
    %v1297 = vadd.f32 0.0, %v1296
    %v1298 = vpop.f32.mrf.mxu0
    %v1299 = vadd.f32 0.0, %v1298
    %1300 = vmatmul.bf16.gmra.mxu0 %v1116
    %v1301 = vpop.f32.mrf.mxu0
    %v1302 = vadd.f32 0.0, %v1301
    %v1303 = vpop.f32.mrf.mxu0
    %v1304 = vadd.f32 0.0, %v1303
    %1305 = vmatmul.bf16.gmra.mxu0 %v1115
    %v1306 = vpop.f32.mrf.mxu0
    %v1307 = vadd.f32 0.0, %v1306
    %v1308 = vpop.f32.mrf.mxu0
    %1309 = vdwg.mxu0
    %1310 = vmatpush.bf16.msra.mxu0 %v1253
    %1311 = vmatpush.bf16.msra.mxu0 %v1251
    %1312 = vmatpush.bf16.msra.mxu0 %v1249
    %1313 = vmatpush.bf16.msra.mxu0 %v1247
    %1314 = vmatpush.bf16.msra.mxu0 %v1245
    %1315 = vmatpush.bf16.msra.mxu0 %v1243
    %1316 = vmatpush.bf16.msra.mxu0 %v1241
    %1317 = vmatpush.bf16.msra.mxu0 %v1239
    %1318 = vmatmul.bf16.gmra.mxu0 %v1112
    %v1319 = vpop.f32.mrf.mxu0
    %v1320 = vadd.f32 %v1297, %v1319
    %v1321 = vpop.f32.mrf.mxu0
    %v1322 = vadd.f32 %v1299, %v1321
    %1323 = vmatmul.bf16.gmra.mxu0 %v1120
    %v1324 = vpop.f32.mrf.mxu0
    %v1325 = vadd.f32 %v1302, %v1324
    %v1326 = vpop.f32.mrf.mxu0
    %v1327 = vadd.f32 %v1304, %v1326
    %1328 = vmatmul.bf16.gmra.mxu0 %v1119
    %v1329 = vpop.f32.mrf.mxu0
    %v1330 = vadd.f32 %v1307, %v1329
    %v1331 = vpop.f32.mrf.mxu0
    %1332 = vdwg.mxu0
    %1333 = vmatpush.bf16.msra.mxu0 %v1238
    %1334 = vmatpush.bf16.msra.mxu0 %v1236
    %1335 = vmatpush.bf16.msra.mxu0 %v1234
    %1336 = vmatpush.bf16.msra.mxu0 %v1232
    %1337 = vmatpush.bf16.msra.mxu0 %v1230
    %1338 = vmatpush.bf16.msra.mxu0 %v1228
    %1339 = vmatpush.bf16.msra.mxu0 %v1226
    %1340 = vmatpush.bf16.msra.mxu0 %v1224
    %1341 = vmatmul.bf16.gmra.mxu0 %v1105
    %v1342 = vpop.f32.mrf.mxu0
    %v1343 = vadd.f32 0.0, %v1342
    %v1344 = vpop.f32.mrf.mxu0
    %v1345 = vadd.f32 0.0, %v1344
    %1346 = vmatmul.bf16.gmra.mxu0 %v1116
    %v1347 = vpop.f32.mrf.mxu0
    %v1348 = vadd.f32 0.0, %v1347
    %v1349 = vpop.f32.mrf.mxu0
    %v1350 = vadd.f32 0.0, %v1349
    %1351 = vmatmul.bf16.gmra.mxu0 %v1115
    %v1352 = vpop.f32.mrf.mxu0
    %v1353 = vadd.f32 0.0, %v1352
    %v1354 = vpop.f32.mrf.mxu0
    %1355 = vdwg.mxu0
    %1356 = vmatpush.bf16.msra.mxu0 %v1254
    %1357 = vmatpush.bf16.msra.mxu0 %v1252
    %1358 = vmatpush.bf16.msra.mxu0 %v1250
    %1359 = vmatpush.bf16.msra.mxu0 %v1248
    %1360 = vmatpush.bf16.msra.mxu0 %v1246
    %1361 = vmatpush.bf16.msra.mxu0 %v1244
    %1362 = vmatpush.bf16.msra.mxu0 %v1242
    %1363 = vmatpush.bf16.msra.mxu0 %v1240
    %1364 = vmatmul.bf16.gmra.mxu0 %v1112
    %v1365 = vpop.f32.mrf.mxu0
    %v1366 = vadd.f32 %v1343, %v1365
    %v1367 = vpop.f32.mrf.mxu0
    %v1368 = vadd.f32 %v1345, %v1367
    %1369 = vmatmul.bf16.gmra.mxu0 %v1120
    %v1370 = vpop.f32.mrf.mxu0
    %v1371 = vadd.f32 %v1348, %v1370
    %v1372 = vpop.f32.mrf.mxu0
    %v1373 = vadd.f32 %v1350, %v1372
    %1374 = vmatmul.bf16.gmra.mxu0 %v1119
    %v1375 = vpop.f32.mrf.mxu0
    %v1376 = vadd.f32 %v1353, %v1375
    %v1377 = vpop.f32.mrf.mxu0
    %1378 = vdwg.mxu0
    %v1379 = vadd.f32 %v1056, %v1320
    %v1380 = vadd.f32 %v1057, %v1366
    %v1381 = vadd.f32 %v1058, %v1322
    %v1382 = vadd.f32 %v1059, %v1368
    %v1383 = vadd.f32 %v1060, %v1325
    %v1384 = vadd.f32 %v1061, %v1371
    %v1385 = vadd.f32 %v1062, %v1327
    %v1386 = vadd.f32 %v1063, %v1373
    %v1387 = vadd.f32 %v1064, %v1330
    %v1388 = vadd.f32 %v1065, %v1376
    %v1389 = vld [vmem:[#allocation7 + $0x400] sm:$0xff]
    %v1390 = vld [vmem:[#allocation7 + $0x408] sm:$0xff]
    %v1391 = vld [vmem:[#allocation7 + $0x410] sm:$0xff]
    %v1392 = vld [vmem:[#allocation7 + $0x418] sm:$0xff]
    %v1393 = vld [vmem:[#allocation7 + $0x420] sm:$0xff]
    %v1394 = vld [vmem:[#allocation7 + $0x428] sm:$0xff]
    %v1395 = vld [vmem:[#allocation7 + $0x430] sm:$0xff]
    %v1396 = vld [vmem:[#allocation7 + $0x438] sm:$0xff]
    %v1397 = vld [vmem:[#allocation7 + $0x440] sm:$0xff]
    %v1398 = vld [vmem:[#allocation7 + $0x448] sm:$0xff]
    %v1399 = vld [vmem:[#allocation7 + $0x450] sm:$0xff]
    %v1400 = vld [vmem:[#allocation7 + $0x458] sm:$0xff]
    %v1401 = vld [vmem:[#allocation7 + $0x460] sm:$0xff]
    %v1402 = vld [vmem:[#allocation7 + $0x468] sm:$0xff]
    %v1403 = vld [vmem:[#allocation7 + $0x470] sm:$0xff]
    %v1404 = vld [vmem:[#allocation7 + $0x478] sm:$0xff]
    %v1405 = vld [vmem:[#allocation7 + $0x480] sm:$0xff]
    %v1406 = vld [vmem:[#allocation7 + $0x488] sm:$0xff]
    %v1407 = vld [vmem:[#allocation7 + $0x490] sm:$0xff]
    %v1408 = vld [vmem:[#allocation7 + $0x498] sm:$0xff]
    %v1409 = vld [vmem:[#allocation7 + $0x4a0] sm:$0xff]
    %v1410 = vld [vmem:[#allocation7 + $0x4a8] sm:$0xff]
    %v1411 = vld [vmem:[#allocation7 + $0x4b0] sm:$0xff]
    %v1412 = vld [vmem:[#allocation7 + $0x4b8] sm:$0xff]
    %v1413 = vld [vmem:[#allocation7 + $0x4c0] sm:$0xff]
    %v1414 = vld [vmem:[#allocation7 + $0x4c8] sm:$0xff]
    %v1415 = vld [vmem:[#allocation7 + $0x4d0] sm:$0xff]
    %v1416 = vld [vmem:[#allocation7 + $0x4d8] sm:$0xff]
    %v1417 = vld [vmem:[#allocation7 + $0x4e0] sm:$0xff]
    %v1418 = vld [vmem:[#allocation7 + $0x4e8] sm:$0xff]
    %v1419 = vld [vmem:[#allocation7 + $0x4f0] sm:$0xff]
    %v1420 = vld [vmem:[#allocation7 + $0x4f8] sm:$0xff]
    %vm1421 = vcmask 1045504
    %v1422 = vrot.slane %v184, 2
    %v1423 = vrot.slane %v186, 2
    %v1424 = vsel %vm1421, %v1422, %v1423
    %v1425 = vrot.slane %v185, 2
    %v1426 = vrot.slane %v187, 2
    %v1427 = vsel %vm1421, %v1425, %v1426
    %v1428 = vrot.slane %v188, 2
    %v1429 = vsel %vm1421, %v1423, %v1428
    %v1430 = vrot.slane %v189, 2
    %v1431 = vsel %vm1421, %v1426, %v1430
    %v1470 = vunpack.c.l.b16 %v1389
    %v1471 = vunpack.c.h.b16 %v1389
    %v1472 = vunpack.c.l.b16 %v1390
    %v1473 = vunpack.c.h.b16 %v1390
    %v1474 = vunpack.c.l.b16 %v1391
    %v1475 = vunpack.c.h.b16 %v1391
    %v1476 = vunpack.c.l.b16 %v1392
    %v1477 = vunpack.c.h.b16 %v1392
    %v1478 = vunpack.c.l.b16 %v1393
    %v1479 = vunpack.c.h.b16 %v1393
    %v1480 = vunpack.c.l.b16 %v1394
    %v1481 = vunpack.c.h.b16 %v1394
    %v1482 = vunpack.c.l.b16 %v1395
    %v1483 = vunpack.c.h.b16 %v1395
    %v1484 = vunpack.c.l.b16 %v1396
    %v1485 = vunpack.c.h.b16 %v1396
    %v1486 = vunpack.c.l.b16 %v1397
    %v1487 = vunpack.c.h.b16 %v1397
    %v1488 = vunpack.c.l.b16 %v1398
    %v1489 = vunpack.c.h.b16 %v1398
    %v1490 = vunpack.c.l.b16 %v1399
    %v1491 = vunpack.c.h.b16 %v1399
    %v1492 = vunpack.c.l.b16 %v1400
    %v1493 = vunpack.c.h.b16 %v1400
    %v1494 = vunpack.c.l.b16 %v1401
    %v1495 = vunpack.c.h.b16 %v1401
    %v1496 = vunpack.c.l.b16 %v1402
    %v1497 = vunpack.c.h.b16 %v1402
    %v1498 = vunpack.c.l.b16 %v1403
    %v1499 = vunpack.c.h.b16 %v1403
    %v1500 = vunpack.c.l.b16 %v1404
    %v1501 = vunpack.c.h.b16 %v1404
    %v1502 = vunpack.c.l.b16 %v1405
    %v1503 = vunpack.c.h.b16 %v1405
    %v1504 = vunpack.c.l.b16 %v1406
    %v1505 = vunpack.c.h.b16 %v1406
    %v1506 = vunpack.c.l.b16 %v1407
    %v1507 = vunpack.c.h.b16 %v1407
    %v1508 = vunpack.c.l.b16 %v1408
    %v1509 = vunpack.c.h.b16 %v1408
    %v1510 = vunpack.c.l.b16 %v1409
    %v1511 = vunpack.c.h.b16 %v1409
    %v1512 = vunpack.c.l.b16 %v1410
    %v1513 = vunpack.c.h.b16 %v1410
    %v1514 = vunpack.c.l.b16 %v1411
    %v1515 = vunpack.c.h.b16 %v1411
    %v1516 = vunpack.c.l.b16 %v1412
    %v1517 = vunpack.c.h.b16 %v1412
    %v1518 = vunpack.c.l.b16 %v1413
    %v1519 = vunpack.c.h.b16 %v1413
    %v1520 = vunpack.c.l.b16 %v1414
    %v1521 = vunpack.c.h.b16 %v1414
    %v1522 = vunpack.c.l.b16 %v1415
    %v1523 = vunpack.c.h.b16 %v1415
    %v1524 = vunpack.c.l.b16 %v1416
    %v1525 = vunpack.c.h.b16 %v1416
    %v1526 = vunpack.c.l.b16 %v1417
    %v1527 = vunpack.c.h.b16 %v1417
    %v1528 = vunpack.c.l.b16 %v1418
    %v1529 = vunpack.c.h.b16 %v1418
    %v1530 = vunpack.c.l.b16 %v1419
    %v1531 = vunpack.c.h.b16 %v1419
    %v1532 = vunpack.c.l.b16 %v1420
    %v1533 = vunpack.c.h.b16 %v1420
    %v1534 = vpack.c.b16 %v1472, %v1470
    %v1535 = vpack.c.b16 %v1473, %v1471
    %v1536 = vpack.c.b16 %v1476, %v1474
    %v1537 = vpack.c.b16 %v1477, %v1475
    %v1538 = vpack.c.b16 %v1480, %v1478
    %v1539 = vpack.c.b16 %v1481, %v1479
    %v1540 = vpack.c.b16 %v1484, %v1482
    %v1541 = vpack.c.b16 %v1485, %v1483
    %v1542 = vpack.c.b16 %v1488, %v1486
    %v1543 = vpack.c.b16 %v1489, %v1487
    %v1544 = vpack.c.b16 %v1492, %v1490
    %v1545 = vpack.c.b16 %v1493, %v1491
    %v1546 = vpack.c.b16 %v1496, %v1494
    %v1547 = vpack.c.b16 %v1497, %v1495
    %v1548 = vpack.c.b16 %v1500, %v1498
    %v1549 = vpack.c.b16 %v1501, %v1499
    %v1550 = vpack.c.b16 %v1504, %v1502
    %v1551 = vpack.c.b16 %v1505, %v1503
    %v1552 = vpack.c.b16 %v1508, %v1506
    %v1553 = vpack.c.b16 %v1509, %v1507
    %v1554 = vpack.c.b16 %v1512, %v1510
    %v1555 = vpack.c.b16 %v1513, %v1511
    %v1556 = vpack.c.b16 %v1516, %v1514
    %v1557 = vpack.c.b16 %v1517, %v1515
    %v1558 = vpack.c.b16 %v1520, %v1518
    %v1559 = vpack.c.b16 %v1521, %v1519
    %v1560 = vpack.c.b16 %v1524, %v1522
    %v1561 = vpack.c.b16 %v1525, %v1523
    %v1562 = vpack.c.b16 %v1528, %v1526
    %v1563 = vpack.c.b16 %v1529, %v1527
    %v1564 = vpack.c.b16 %v1532, %v1530
    %v1565 = vpack.c.b16 %v1533, %v1531
    %1598 = vmatpush.bf16.msra.mxu0 %v1548
    %1599 = vmatpush.bf16.msra.mxu0 %v1546
    %1600 = vmatpush.bf16.msra.mxu0 %v1544
    %1601 = vmatpush.bf16.msra.mxu0 %v1542
    %1602 = vmatpush.bf16.msra.mxu0 %v1540
    %1603 = vmatpush.bf16.msra.mxu0 %v1538
    %1604 = vmatpush.bf16.msra.mxu0 %v1536
    %1605 = vmatpush.bf16.msra.mxu0 %v1534
    %1606 = vmatmul.bf16.gmra.mxu0 %v1424
    %v1607 = vpop.f32.mrf.mxu0
    %v1608 = vadd.f32 0.0, %v1607
    %v1609 = vpop.f32.mrf.mxu0
    %v1610 = vadd.f32 0.0, %v1609
    %1611 = vmatmul.bf16.gmra.mxu0 %v1429
    %v1612 = vpop.f32.mrf.mxu0
    %v1613 = vadd.f32 0.0, %v1612
    %v1614 = vpop.f32.mrf.mxu0
    %v1615 = vadd.f32 0.0, %v1614
    %1616 = vmatmul.bf16.gmra.mxu0 %v1428
    %v1617 = vpop.f32.mrf.mxu0
    %v1618 = vadd.f32 0.0, %v1617
    %v1619 = vpop.f32.mrf.mxu0
    %1620 = vdwg.mxu0
    %1621 = vmatpush.bf16.msra.mxu0 %v1564
    %1622 = vmatpush.bf16.msra.mxu0 %v1562
    %1623 = vmatpush.bf16.msra.mxu0 %v1560
    %1624 = vmatpush.bf16.msra.mxu0 %v1558
    %1625 = vmatpush.bf16.msra.mxu0 %v1556
    %1626 = vmatpush.bf16.msra.mxu0 %v1554
    %1627 = vmatpush.bf16.msra.mxu0 %v1552
    %1628 = vmatpush.bf16.msra.mxu0 %v1550
    %1629 = vmatmul.bf16.gmra.mxu0 %v1427
    %v1630 = vpop.f32.mrf.mxu0
    %v1631 = vadd.f32 %v1608, %v1630
    %v1632 = vpop.f32.mrf.mxu0
    %v1633 = vadd.f32 %v1610, %v1632
    %1634 = vmatmul.bf16.gmra.mxu0 %v1431
    %v1635 = vpop.f32.mrf.mxu0
    %v1636 = vadd.f32 %v1613, %v1635
    %v1637 = vpop.f32.mrf.mxu0
    %v1638 = vadd.f32 %v1615, %v1637
    %1639 = vmatmul.bf16.gmra.mxu0 %v1430
    %v1640 = vpop.f32.mrf.mxu0
    %v1641 = vadd.f32 %v1618, %v1640
    %v1642 = vpop.f32.mrf.mxu0
    %1643 = vdwg.mxu0
    %1644 = vmatpush.bf16.msra.mxu0 %v1549
    %1645 = vmatpush.bf16.msra.mxu0 %v1547
    %1646 = vmatpush.bf16.msra.mxu0 %v1545
    %1647 = vmatpush.bf16.msra.mxu0 %v1543
    %1648 = vmatpush.bf16.msra.mxu0 %v1541
    %1649 = vmatpush.bf16.msra.mxu0 %v1539
    %1650 = vmatpush.bf16.msra.mxu0 %v1537
    %1651 = vmatpush.bf16.msra.mxu0 %v1535
    %1652 = vmatmul.bf16.gmra.mxu0 %v1424
    %v1653 = vpop.f32.mrf.mxu0
    %v1654 = vadd.f32 0.0, %v1653
    %v1655 = vpop.f32.mrf.mxu0
    %v1656 = vadd.f32 0.0, %v1655
    %1657 = vmatmul.bf16.gmra.mxu0 %v1429
    %v1658 = vpop.f32.mrf.mxu0
    %v1659 = vadd.f32 0.0, %v1658
    %v1660 = vpop.f32.mrf.mxu0
    %v1661 = vadd.f32 0.0, %v1660
    %1662 = vmatmul.bf16.gmra.mxu0 %v1428
    %v1663 = vpop.f32.mrf.mxu0
    %v1664 = vadd.f32 0.0, %v1663
    %v1665 = vpop.f32.mrf.mxu0
    %1666 = vdwg.mxu0
    %1667 = vmatpush.bf16.msra.mxu0 %v1565
    %1668 = vmatpush.bf16.msra.mxu0 %v1563
    %1669 = vmatpush.bf16.msra.mxu0 %v1561
    %1670 = vmatpush.bf16.msra.mxu0 %v1559
    %1671 = vmatpush.bf16.msra.mxu0 %v1557
    %1672 = vmatpush.bf16.msra.mxu0 %v1555
    %1673 = vmatpush.bf16.msra.mxu0 %v1553
    %1674 = vmatpush.bf16.msra.mxu0 %v1551
    %1675 = vmatmul.bf16.gmra.mxu0 %v1427
    %v1676 = vpop.f32.mrf.mxu0
    %v1677 = vadd.f32 %v1654, %v1676
    %v1678 = vpop.f32.mrf.mxu0
    %v1679 = vadd.f32 %v1656, %v1678
    %1680 = vmatmul.bf16.gmra.mxu0 %v1431
    %v1681 = vpop.f32.mrf.mxu0
    %v1682 = vadd.f32 %v1659, %v1681
    %v1683 = vpop.f32.mrf.mxu0
    %v1684 = vadd.f32 %v1661, %v1683
    %1685 = vmatmul.bf16.gmra.mxu0 %v1430
    %v1686 = vpop.f32.mrf.mxu0
    %v1687 = vadd.f32 %v1664, %v1686
    %v1688 = vpop.f32.mrf.mxu0
    %1689 = vdwg.mxu0
    %v1690 = vadd.f32 %v1379, %v1631
    %v1691 = vadd.f32 %v1380, %v1677
    %v1692 = vadd.f32 %v1381, %v1633
    %v1693 = vadd.f32 %v1382, %v1679
    %v1694 = vadd.f32 %v1383, %v1636
    %v1695 = vadd.f32 %v1384, %v1682
    %v1696 = vadd.f32 %v1385, %v1638
    %v1697 = vadd.f32 %v1386, %v1684
    %v1698 = vadd.f32 %v1387, %v1641
    %v1699 = vadd.f32 %v1388, %v1687
    %v1700 = vld [vmem:[%s3] sm:$0x3]
    %v1702 = vperm.slane %v1700, 0
    %v1703 = vperm.slane %v1700, 1
    %v1706 = vadd.f32 %v1690, %v1702
    %v1707 = vadd.f32 %v1691, %v1703
    %v1708 = vadd.f32 %v1692, %v1702
    %v1709 = vadd.f32 %v1693, %v1703
    %v1710 = vadd.f32 %v1694, %v1702
    %v1711 = vadd.f32 %v1695, %v1703
    %v1712 = vadd.f32 %v1696, %v1702
    %v1713 = vadd.f32 %v1697, %v1703
    %v1714 = vadd.f32 %v1698, %v1702
    %v1715 = vadd.f32 %v1699, %v1703
    %v1716 = vmax.f32 %v1706, 0.0
    %v1717 = vmax.f32 %v1707, 0.0
    %v1718 = vmax.f32 %v1708, 0.0
    %v1719 = vmax.f32 %v1709, 0.0
    %v1720 = vmax.f32 %v1710, 0.0
    %v1721 = vmax.f32 %v1711, 0.0
    %v1722 = vmax.f32 %v1712, 0.0
    %v1723 = vmax.f32 %v1713, 0.0
    %v1724 = vmax.f32 %v1714, 0.0
    %v1725 = vmax.f32 %v1715, 0.0
    %1727 = vset.pattern.permute.xlu0 0
    %1728 = vperm.xlu0 %1727, %v97
    %v1729 = vpop.permute.xlu0 %1728
    %1732 = vset.pattern.permute.xlu0 0
    %1733 = vperm.xlu0 %1732, %v98
    %v1734 = vpop.permute.xlu0 %1733
    %1737 = vset.pattern.permute.xlu0 0
    %1738 = vperm.xlu0 %1737, %v99
    %v1739 = vpop.permute.xlu0 %1738
    %1742 = vset.pattern.permute.xlu0 0
    %1743 = vperm.xlu0 %1742, %v100
    %v1744 = vpop.permute.xlu0 %1743
    %1747 = vset.pattern.permute.xlu0 0
    %1748 = vperm.xlu0 %1747, %v101
    %v1749 = vpop.permute.xlu0 %1748
    %v1751 = vmul.f32 %v1716, %v1729
    %v1752 = vmul.f32 %v1717, %v1729
    %v1753 = vmul.f32 %v1718, %v1734
    %v1754 = vmul.f32 %v1719, %v1734
    %v1755 = vmul.f32 %v1720, %v1739
    %v1756 = vmul.f32 %v1721, %v1739
    %v1757 = vmul.f32 %v1722, %v1744
    %v1758 = vmul.f32 %v1723, %v1744
    %v1759 = vmul.f32 %v1724, %v1749
    %v1760 = vmul.f32 %v1725, %v1749
    %v1761 = vpack.c.bf16 %v1752, %v1751
    %v1762 = vpack.c.bf16 %v1754, %v1753
    %v1763 = vpack.c.bf16 %v1756, %v1755
    %v1764 = vpack.c.bf16 %v1758, %v1757
    %v1765 = vpack.c.bf16 %v1760, %v1759
    %v1771 = vunpack.c.l.b16 %v1761
    %v1772 = vunpack.c.h.b16 %v1761
    %v1773 = vunpack.c.l.b16 %v1762
    %v1774 = vunpack.c.h.b16 %v1762
    %v1775 = vunpack.c.l.b16 %v1763
    %v1776 = vunpack.c.h.b16 %v1763
    %v1777 = vunpack.c.l.b16 %v1764
    %v1778 = vunpack.c.h.b16 %v1764
    %v1779 = vunpack.c.l.b16 %v1765
    %v1780 = vunpack.c.h.b16 %v1765
    %v1781 = vpack.c.b16 %v1773, %v1771
    %v1782 = vpack.c.b16 %v1774, %v1772
    %v1783 = vpack.c.b16 %v1777, %v1775
    %v1784 = vpack.c.b16 %v1778, %v1776
    %v1785 = vpack.c.b16 %v1779, %v1779
    %v1786 = vpack.c.b16 %v1780, %v1780
    %vm1787 = vcmask 1040384
    %v1788 = vrot.slane %v1781, 7
    %v1789 = vrot.slane %v1782, 7
    %v1790 = vrot.slane %v1783, 7
    %v1791 = vsel %vm1787, %v1788, %v1790
    %v1792 = vrot.slane %v1784, 7
    %v1793 = vsel %vm1787, %v1789, %v1792
    %v1794 = vrot.slane %v1785, 7
    %v1795 = vsel %vm1787, %v1790, %v1794
    %v1796 = vrot.slane %v1786, 7
    %v1797 = vsel %vm1787, %v1792, %v1796
    %vm1800 = vcmask 1040384
    %v1803 = vsel %vm1800, 0, %v1788
    %v1806 = vsel %vm1800, 0, %v1789
    %vm1808 = vcmask 1044480
    %v1810 = vsel %vm1808, %v1795, 0
    %v1813 = vsel %vm1808, %v1797, 0
    %v1815 = vld [vmem:[#allocation8] sm:$0xff]
    %v1816 = vld [vmem:[#allocation8 + $0x8] sm:$0xff]
    %v1817 = vld [vmem:[#allocation8 + $0x10] sm:$0xff]
    %v1818 = vld [vmem:[#allocation8 + $0x18] sm:$0xff]
    %v1819 = vld [vmem:[#allocation8 + $0x20] sm:$0xff]
    %v1820 = vld [vmem:[#allocation8 + $0x28] sm:$0xff]
    %v1821 = vld [vmem:[#allocation8 + $0x30] sm:$0xff]
    %v1822 = vld [vmem:[#allocation8 + $0x38] sm:$0xff]
    %v1823 = vld [vmem:[#allocation8 + $0x40] sm:$0xff]
    %v1824 = vld [vmem:[#allocation8 + $0x48] sm:$0xff]
    %v1825 = vld [vmem:[#allocation8 + $0x50] sm:$0xff]
    %v1826 = vld [vmem:[#allocation8 + $0x58] sm:$0xff]
    %v1827 = vld [vmem:[#allocation8 + $0x60] sm:$0xff]
    %v1828 = vld [vmem:[#allocation8 + $0x68] sm:$0xff]
    %v1829 = vld [vmem:[#allocation8 + $0x70] sm:$0xff]
    %v1830 = vld [vmem:[#allocation8 + $0x78] sm:$0xff]
    %v1831 = vld [vmem:[#allocation8 + $0x80] sm:$0xff]
    %v1832 = vld [vmem:[#allocation8 + $0x88] sm:$0xff]
    %v1833 = vld [vmem:[#allocation8 + $0x90] sm:$0xff]
    %v1834 = vld [vmem:[#allocation8 + $0x98] sm:$0xff]
    %v1835 = vld [vmem:[#allocation8 + $0xa0] sm:$0xff]
    %v1836 = vld [vmem:[#allocation8 + $0xa8] sm:$0xff]
    %v1837 = vld [vmem:[#allocation8 + $0xb0] sm:$0xff]
    %v1838 = vld [vmem:[#allocation8 + $0xb8] sm:$0xff]
    %v1839 = vld [vmem:[#allocation8 + $0xc0] sm:$0xff]
    %v1840 = vld [vmem:[#allocation8 + $0xc8] sm:$0xff]
    %v1841 = vld [vmem:[#allocation8 + $0xd0] sm:$0xff]
    %v1842 = vld [vmem:[#allocation8 + $0xd8] sm:$0xff]
    %v1843 = vld [vmem:[#allocation8 + $0xe0] sm:$0xff]
    %v1844 = vld [vmem:[#allocation8 + $0xe8] sm:$0xff]
    %v1845 = vld [vmem:[#allocation8 + $0xf0] sm:$0xff]
    %v1846 = vld [vmem:[#allocation8 + $0xf8] sm:$0xff]
    %v1847 = vld [vmem:[#allocation8 + $0x100] sm:$0xff]
    %v1848 = vld [vmem:[#allocation8 + $0x108] sm:$0xff]
    %v1849 = vld [vmem:[#allocation8 + $0x110] sm:$0xff]
    %v1850 = vld [vmem:[#allocation8 + $0x118] sm:$0xff]
    %v1851 = vld [vmem:[#allocation8 + $0x120] sm:$0xff]
    %v1852 = vld [vmem:[#allocation8 + $0x128] sm:$0xff]
    %v1853 = vld [vmem:[#allocation8 + $0x130] sm:$0xff]
    %v1854 = vld [vmem:[#allocation8 + $0x138] sm:$0xff]
    %v1855 = vld [vmem:[#allocation8 + $0x140] sm:$0xff]
    %v1856 = vld [vmem:[#allocation8 + $0x148] sm:$0xff]
    %v1857 = vld [vmem:[#allocation8 + $0x150] sm:$0xff]
    %v1858 = vld [vmem:[#allocation8 + $0x158] sm:$0xff]
    %v1859 = vld [vmem:[#allocation8 + $0x160] sm:$0xff]
    %v1860 = vld [vmem:[#allocation8 + $0x168] sm:$0xff]
    %v1861 = vld [vmem:[#allocation8 + $0x170] sm:$0xff]
    %v1862 = vld [vmem:[#allocation8 + $0x178] sm:$0xff]
    %v1863 = vld [vmem:[#allocation8 + $0x180] sm:$0xff]
    %v1864 = vld [vmem:[#allocation8 + $0x188] sm:$0xff]
    %v1865 = vld [vmem:[#allocation8 + $0x190] sm:$0xff]
    %v1866 = vld [vmem:[#allocation8 + $0x198] sm:$0xff]
    %v1867 = vld [vmem:[#allocation8 + $0x1a0] sm:$0xff]
    %v1868 = vld [vmem:[#allocation8 + $0x1a8] sm:$0xff]
    %v1869 = vld [vmem:[#allocation8 + $0x1b0] sm:$0xff]
    %v1870 = vld [vmem:[#allocation8 + $0x1b8] sm:$0xff]
    %v1871 = vld [vmem:[#allocation8 + $0x1c0] sm:$0xff]
    %v1872 = vld [vmem:[#allocation8 + $0x1c8] sm:$0xff]
    %v1873 = vld [vmem:[#allocation8 + $0x1d0] sm:$0xff]
    %v1874 = vld [vmem:[#allocation8 + $0x1d8] sm:$0xff]
    %v1875 = vld [vmem:[#allocation8 + $0x1e0] sm:$0xff]
    %v1876 = vld [vmem:[#allocation8 + $0x1e8] sm:$0xff]
    %v1877 = vld [vmem:[#allocation8 + $0x1f0] sm:$0xff]
    %v1878 = vld [vmem:[#allocation8 + $0x1f8] sm:$0xff]
    %v1879 = vshrl.u32 %v1803, 16
    %v1881 = vshll.u32 %v1803, 16
    %v1883 = vrot.slane %v1881, 1
    %v1884 = vor.u32 %v1879, %v1883
    %v1886 = vshll.u32 %v1791, 16
    %v1888 = vrot.slane %v1886, 1
    %v1889 = vsel %vm190, %v1884, %v1888
    %v1890 = vshrl.u32 %v1806, 16
    %v1892 = vshll.u32 %v1806, 16
    %v1894 = vrot.slane %v1892, 1
    %v1895 = vor.u32 %v1890, %v1894
    %v1897 = vshll.u32 %v1793, 16
    %v1899 = vrot.slane %v1897, 1
    %v1900 = vsel %vm190, %v1895, %v1899
    %v1901 = vshrl.u32 %v1791, 16
    %v1903 = vor.u32 %v1901, %v1888
    %v1904 = vshll.u32 %v1810, 16
    %v1906 = vrot.slane %v1904, 1
    %v1907 = vsel %vm190, %v1903, %v1906
    %v1908 = vshrl.u32 %v1793, 16
    %v1910 = vor.u32 %v1908, %v1899
    %v1911 = vshll.u32 %v1813, 16
    %v1913 = vrot.slane %v1911, 1
    %v1914 = vsel %vm190, %v1910, %v1913
    %v1915 = vshrl.u32 %v1810, 16
    %v1917 = vor.u32 %v1915, %v1906
    %v1918 = vshrl.u32 %v1813, 16
    %v1920 = vor.u32 %v1918, %v1913
    %v1959 = vunpack.c.l.b16 %v1847
    %v1960 = vunpack.c.h.b16 %v1847
    %v1961 = vunpack.c.l.b16 %v1848
    %v1962 = vunpack.c.h.b16 %v1848
    %v1963 = vunpack.c.l.b16 %v1849
    %v1964 = vunpack.c.h.b16 %v1849
    %v1965 = vunpack.c.l.b16 %v1850
    %v1966 = vunpack.c.h.b16 %v1850
    %v1967 = vunpack.c.l.b16 %v1851
    %v1968 = vunpack.c.h.b16 %v1851
    %v1969 = vunpack.c.l.b16 %v1852
    %v1970 = vunpack.c.h.b16 %v1852
    %v1971 = vunpack.c.l.b16 %v1853
    %v1972 = vunpack.c.h.b16 %v1853
    %v1973 = vunpack.c.l.b16 %v1854
    %v1974 = vunpack.c.h.b16 %v1854
    %v1975 = vunpack.c.l.b16 %v1855
    %v1976 = vunpack.c.h.b16 %v1855
    %v1977 = vunpack.c.l.b16 %v1856
    %v1978 = vunpack.c.h.b16 %v1856
    %v1979 = vunpack.c.l.b16 %v1857
    %v1980 = vunpack.c.h.b16 %v1857
    %v1981 = vunpack.c.l.b16 %v1858
    %v1982 = vunpack.c.h.b16 %v1858
    %v1983 = vunpack.c.l.b16 %v1859
    %v1984 = vunpack.c.h.b16 %v1859
    %v1985 = vunpack.c.l.b16 %v1860
    %v1986 = vunpack.c.h.b16 %v1860
    %v1987 = vunpack.c.l.b16 %v1861
    %v1988 = vunpack.c.h.b16 %v1861
    %v1989 = vunpack.c.l.b16 %v1862
    %v1990 = vunpack.c.h.b16 %v1862
    %v1991 = vunpack.c.l.b16 %v1863
    %v1992 = vunpack.c.h.b16 %v1863
    %v1993 = vunpack.c.l.b16 %v1864
    %v1994 = vunpack.c.h.b16 %v1864
    %v1995 = vunpack.c.l.b16 %v1865
    %v1996 = vunpack.c.h.b16 %v1865
    %v1997 = vunpack.c.l.b16 %v1866
    %v1998 = vunpack.c.h.b16 %v1866
    %v1999 = vunpack.c.l.b16 %v1867
    %v2000 = vunpack.c.h.b16 %v1867
    %v2001 = vunpack.c.l.b16 %v1868
    %v2002 = vunpack.c.h.b16 %v1868
    %v2003 = vunpack.c.l.b16 %v1869
    %v2004 = vunpack.c.h.b16 %v1869
    %v2005 = vunpack.c.l.b16 %v1870
    %v2006 = vunpack.c.h.b16 %v1870
    %v2007 = vunpack.c.l.b16 %v1871
    %v2008 = vunpack.c.h.b16 %v1871
    %v2009 = vunpack.c.l.b16 %v1872
    %v2010 = vunpack.c.h.b16 %v1872
    %v2011 = vunpack.c.l.b16 %v1873
    %v2012 = vunpack.c.h.b16 %v1873
    %v2013 = vunpack.c.l.b16 %v1874
    %v2014 = vunpack.c.h.b16 %v1874
    %v2015 = vunpack.c.l.b16 %v1875
    %v2016 = vunpack.c.h.b16 %v1875
    %v2017 = vunpack.c.l.b16 %v1876
    %v2018 = vunpack.c.h.b16 %v1876
    %v2019 = vunpack.c.l.b16 %v1877
    %v2020 = vunpack.c.h.b16 %v1877
    %v2021 = vunpack.c.l.b16 %v1878
    %v2022 = vunpack.c.h.b16 %v1878
    %v2023 = vpack.c.b16 %v1961, %v1959
    %v2024 = vpack.c.b16 %v1962, %v1960
    %v2025 = vpack.c.b16 %v1965, %v1963
    %v2026 = vpack.c.b16 %v1966, %v1964
    %v2027 = vpack.c.b16 %v1969, %v1967
    %v2028 = vpack.c.b16 %v1970, %v1968
    %v2029 = vpack.c.b16 %v1973, %v1971
    %v2030 = vpack.c.b16 %v1974, %v1972
    %v2031 = vpack.c.b16 %v1977, %v1975
    %v2032 = vpack.c.b16 %v1978, %v1976
    %v2033 = vpack.c.b16 %v1981, %v1979
    %v2034 = vpack.c.b16 %v1982, %v1980
    %v2035 = vpack.c.b16 %v1985, %v1983
    %v2036 = vpack.c.b16 %v1986, %v1984
    %v2037 = vpack.c.b16 %v1989, %v1987
    %v2038 = vpack.c.b16 %v1990, %v1988
    %v2039 = vpack.c.b16 %v1993, %v1991
    %v2040 = vpack.c.b16 %v1994, %v1992
    %v2041 = vpack.c.b16 %v1997, %v1995
    %v2042 = vpack.c.b16 %v1998, %v1996
    %v2043 = vpack.c.b16 %v2001, %v1999
    %v2044 = vpack.c.b16 %v2002, %v2000
    %v2045 = vpack.c.b16 %v2005, %v2003
    %v2046 = vpack.c.b16 %v2006, %v2004
    %v2047 = vpack.c.b16 %v2009, %v2007
    %v2048 = vpack.c.b16 %v2010, %v2008
    %v2049 = vpack.c.b16 %v2013, %v2011
    %v2050 = vpack.c.b16 %v2014, %v2012
    %v2051 = vpack.c.b16 %v2017, %v2015
    %v2052 = vpack.c.b16 %v2018, %v2016
    %v2053 = vpack.c.b16 %v2021, %v2019
    %v2054 = vpack.c.b16 %v2022, %v2020
    %2087 = vmatpush.bf16.msra.mxu0 %v2037
    %2088 = vmatpush.bf16.msra.mxu0 %v2035
    %2089 = vmatpush.bf16.msra.mxu0 %v2033
    %2090 = vmatpush.bf16.msra.mxu0 %v2031
    %2091 = vmatpush.bf16.msra.mxu0 %v2029
    %2092 = vmatpush.bf16.msra.mxu0 %v2027
    %2093 = vmatpush.bf16.msra.mxu0 %v2025
    %2094 = vmatpush.bf16.msra.mxu0 %v2023
    %2095 = vmatmul.bf16.gmra.mxu0 %v1889
    %v2096 = vpop.f32.mrf.mxu0
    %v2097 = vadd.f32 0.0, %v2096
    %v2098 = vpop.f32.mrf.mxu0
    %v2099 = vadd.f32 0.0, %v2098
    %2100 = vmatmul.bf16.gmra.mxu0 %v1907
    %v2101 = vpop.f32.mrf.mxu0
    %v2102 = vadd.f32 0.0, %v2101
    %v2103 = vpop.f32.mrf.mxu0
    %v2104 = vadd.f32 0.0, %v2103
    %2105 = vmatmul.bf16.gmra.mxu0 %v1917
    %v2106 = vpop.f32.mrf.mxu0
    %v2107 = vadd.f32 0.0, %v2106
    %v2108 = vpop.f32.mrf.mxu0
    %2109 = vdwg.mxu0
    %2110 = vmatpush.bf16.msra.mxu0 %v2053
    %2111 = vmatpush.bf16.msra.mxu0 %v2051
    %2112 = vmatpush.bf16.msra.mxu0 %v2049
    %2113 = vmatpush.bf16.msra.mxu0 %v2047
    %2114 = vmatpush.bf16.msra.mxu0 %v2045
    %2115 = vmatpush.bf16.msra.mxu0 %v2043
    %2116 = vmatpush.bf16.msra.mxu0 %v2041
    %2117 = vmatpush.bf16.msra.mxu0 %v2039
    %2118 = vmatmul.bf16.gmra.mxu0 %v1900
    %v2119 = vpop.f32.mrf.mxu0
    %v2120 = vadd.f32 %v2097, %v2119
    %v2121 = vpop.f32.mrf.mxu0
    %v2122 = vadd.f32 %v2099, %v2121
    %2123 = vmatmul.bf16.gmra.mxu0 %v1914
    %v2124 = vpop.f32.mrf.mxu0
    %v2125 = vadd.f32 %v2102, %v2124
    %v2126 = vpop.f32.mrf.mxu0
    %v2127 = vadd.f32 %v2104, %v2126
    %2128 = vmatmul.bf16.gmra.mxu0 %v1920
    %v2129 = vpop.f32.mrf.mxu0
    %v2130 = vadd.f32 %v2107, %v2129
    %v2131 = vpop.f32.mrf.mxu0
    %2132 = vdwg.mxu0
    %2133 = vmatpush.bf16.msra.mxu0 %v2038
    %2134 = vmatpush.bf16.msra.mxu0 %v2036
    %2135 = vmatpush.bf16.msra.mxu0 %v2034
    %2136 = vmatpush.bf16.msra.mxu0 %v2032
    %2137 = vmatpush.bf16.msra.mxu0 %v2030
    %2138 = vmatpush.bf16.msra.mxu0 %v2028
    %2139 = vmatpush.bf16.msra.mxu0 %v2026
    %2140 = vmatpush.bf16.msra.mxu0 %v2024
    %2141 = vmatmul.bf16.gmra.mxu0 %v1889
    %v2142 = vpop.f32.mrf.mxu0
    %v2143 = vadd.f32 0.0, %v2142
    %v2144 = vpop.f32.mrf.mxu0
    %v2145 = vadd.f32 0.0, %v2144
    %2146 = vmatmul.bf16.gmra.mxu0 %v1907
    %v2147 = vpop.f32.mrf.mxu0
    %v2148 = vadd.f32 0.0, %v2147
    %v2149 = vpop.f32.mrf.mxu0
    %v2150 = vadd.f32 0.0, %v2149
    %2151 = vmatmul.bf16.gmra.mxu0 %v1917
    %v2152 = vpop.f32.mrf.mxu0
    %v2153 = vadd.f32 0.0, %v2152
    %v2154 = vpop.f32.mrf.mxu0
    %2155 = vdwg.mxu0
    %2156 = vmatpush.bf16.msra.mxu0 %v2054
    %2157 = vmatpush.bf16.msra.mxu0 %v2052
    %2158 = vmatpush.bf16.msra.mxu0 %v2050
    %2159 = vmatpush.bf16.msra.mxu0 %v2048
    %2160 = vmatpush.bf16.msra.mxu0 %v2046
    %2161 = vmatpush.bf16.msra.mxu0 %v2044
    %2162 = vmatpush.bf16.msra.mxu0 %v2042
    %2163 = vmatpush.bf16.msra.mxu0 %v2040
    %2164 = vmatmul.bf16.gmra.mxu0 %v1900
    %v2165 = vpop.f32.mrf.mxu0
    %v2166 = vadd.f32 %v2143, %v2165
    %v2167 = vpop.f32.mrf.mxu0
    %v2168 = vadd.f32 %v2145, %v2167
    %2169 = vmatmul.bf16.gmra.mxu0 %v1914
    %v2170 = vpop.f32.mrf.mxu0
    %v2171 = vadd.f32 %v2148, %v2170
    %v2172 = vpop.f32.mrf.mxu0
    %v2173 = vadd.f32 %v2150, %v2172
    %2174 = vmatmul.bf16.gmra.mxu0 %v1920
    %v2175 = vpop.f32.mrf.mxu0
    %v2176 = vadd.f32 %v2153, %v2175
    %v2177 = vpop.f32.mrf.mxu0
    %2178 = vdwg.mxu0
    %v2211 = vunpack.c.l.b16 %v1815
    %v2212 = vunpack.c.h.b16 %v1815
    %v2213 = vunpack.c.l.b16 %v1816
    %v2214 = vunpack.c.h.b16 %v1816
    %v2215 = vunpack.c.l.b16 %v1817
    %v2216 = vunpack.c.h.b16 %v1817
    %v2217 = vunpack.c.l.b16 %v1818
    %v2218 = vunpack.c.h.b16 %v1818
    %v2219 = vunpack.c.l.b16 %v1819
    %v2220 = vunpack.c.h.b16 %v1819
    %v2221 = vunpack.c.l.b16 %v1820
    %v2222 = vunpack.c.h.b16 %v1820
    %v2223 = vunpack.c.l.b16 %v1821
    %v2224 = vunpack.c.h.b16 %v1821
    %v2225 = vunpack.c.l.b16 %v1822
    %v2226 = vunpack.c.h.b16 %v1822
    %v2227 = vunpack.c.l.b16 %v1823
    %v2228 = vunpack.c.h.b16 %v1823
    %v2229 = vunpack.c.l.b16 %v1824
    %v2230 = vunpack.c.h.b16 %v1824
    %v2231 = vunpack.c.l.b16 %v1825
    %v2232 = vunpack.c.h.b16 %v1825
    %v2233 = vunpack.c.l.b16 %v1826
    %v2234 = vunpack.c.h.b16 %v1826
    %v2235 = vunpack.c.l.b16 %v1827
    %v2236 = vunpack.c.h.b16 %v1827
    %v2237 = vunpack.c.l.b16 %v1828
    %v2238 = vunpack.c.h.b16 %v1828
    %v2239 = vunpack.c.l.b16 %v1829
    %v2240 = vunpack.c.h.b16 %v1829
    %v2241 = vunpack.c.l.b16 %v1830
    %v2242 = vunpack.c.h.b16 %v1830
    %v2243 = vunpack.c.l.b16 %v1831
    %v2244 = vunpack.c.h.b16 %v1831
    %v2245 = vunpack.c.l.b16 %v1832
    %v2246 = vunpack.c.h.b16 %v1832
    %v2247 = vunpack.c.l.b16 %v1833
    %v2248 = vunpack.c.h.b16 %v1833
    %v2249 = vunpack.c.l.b16 %v1834
    %v2250 = vunpack.c.h.b16 %v1834
    %v2251 = vunpack.c.l.b16 %v1835
    %v2252 = vunpack.c.h.b16 %v1835
    %v2253 = vunpack.c.l.b16 %v1836
    %v2254 = vunpack.c.h.b16 %v1836
    %v2255 = vunpack.c.l.b16 %v1837
    %v2256 = vunpack.c.h.b16 %v1837
    %v2257 = vunpack.c.l.b16 %v1838
    %v2258 = vunpack.c.h.b16 %v1838
    %v2259 = vunpack.c.l.b16 %v1839
    %v2260 = vunpack.c.h.b16 %v1839
    %v2261 = vunpack.c.l.b16 %v1840
    %v2262 = vunpack.c.h.b16 %v1840
    %v2263 = vunpack.c.l.b16 %v1841
    %v2264 = vunpack.c.h.b16 %v1841
    %v2265 = vunpack.c.l.b16 %v1842
    %v2266 = vunpack.c.h.b16 %v1842
    %v2267 = vunpack.c.l.b16 %v1843
    %v2268 = vunpack.c.h.b16 %v1843
    %v2269 = vunpack.c.l.b16 %v1844
    %v2270 = vunpack.c.h.b16 %v1844
    %v2271 = vunpack.c.l.b16 %v1845
    %v2272 = vunpack.c.h.b16 %v1845
    %v2273 = vunpack.c.l.b16 %v1846
    %v2274 = vunpack.c.h.b16 %v1846
    %v2275 = vpack.c.b16 %v2213, %v2211
    %v2276 = vpack.c.b16 %v2214, %v2212
    %v2277 = vpack.c.b16 %v2217, %v2215
    %v2278 = vpack.c.b16 %v2218, %v2216
    %v2279 = vpack.c.b16 %v2221, %v2219
    %v2280 = vpack.c.b16 %v2222, %v2220
    %v2281 = vpack.c.b16 %v2225, %v2223
    %v2282 = vpack.c.b16 %v2226, %v2224
    %v2283 = vpack.c.b16 %v2229, %v2227
    %v2284 = vpack.c.b16 %v2230, %v2228
    %v2285 = vpack.c.b16 %v2233, %v2231
    %v2286 = vpack.c.b16 %v2234, %v2232
    %v2287 = vpack.c.b16 %v2237, %v2235
    %v2288 = vpack.c.b16 %v2238, %v2236
    %v2289 = vpack.c.b16 %v2241, %v2239
    %v2290 = vpack.c.b16 %v2242, %v2240
    %v2291 = vpack.c.b16 %v2245, %v2243
    %v2292 = vpack.c.b16 %v2246, %v2244
    %v2293 = vpack.c.b16 %v2249, %v2247
    %v2294 = vpack.c.b16 %v2250, %v2248
    %v2295 = vpack.c.b16 %v2253, %v2251
    %v2296 = vpack.c.b16 %v2254, %v2252
    %v2297 = vpack.c.b16 %v2257, %v2255
    %v2298 = vpack.c.b16 %v2258, %v2256
    %v2299 = vpack.c.b16 %v2261, %v2259
    %v2300 = vpack.c.b16 %v2262, %v2260
    %v2301 = vpack.c.b16 %v2265, %v2263
    %v2302 = vpack.c.b16 %v2266, %v2264
    %v2303 = vpack.c.b16 %v2269, %v2267
    %v2304 = vpack.c.b16 %v2270, %v2268
    %v2305 = vpack.c.b16 %v2273, %v2271
    %v2306 = vpack.c.b16 %v2274, %v2272
    %2339 = vmatpush.bf16.msra.mxu0 %v2289
    %2340 = vmatpush.bf16.msra.mxu0 %v2287
    %2341 = vmatpush.bf16.msra.mxu0 %v2285
    %2342 = vmatpush.bf16.msra.mxu0 %v2283
    %2343 = vmatpush.bf16.msra.mxu0 %v2281
    %2344 = vmatpush.bf16.msra.mxu0 %v2279
    %2345 = vmatpush.bf16.msra.mxu0 %v2277
    %2346 = vmatpush.bf16.msra.mxu0 %v2275
    %2347 = vmatmul.bf16.gmra.mxu0 %v1803
    %v2348 = vpop.f32.mrf.mxu0
    %v2349 = vadd.f32 %v2120, %v2348
    %v2350 = vpop.f32.mrf.mxu0
    %v2351 = vadd.f32 %v2122, %v2350
    %2352 = vmatmul.bf16.gmra.mxu0 %v1791
    %v2353 = vpop.f32.mrf.mxu0
    %v2354 = vadd.f32 %v2125, %v2353
    %v2355 = vpop.f32.mrf.mxu0
    %v2356 = vadd.f32 %v2127, %v2355
    %2357 = vmatmul.bf16.gmra.mxu0 %v1810
    %v2358 = vpop.f32.mrf.mxu0
    %v2359 = vadd.f32 %v2130, %v2358
    %v2360 = vpop.f32.mrf.mxu0
    %2361 = vdwg.mxu0
    %2362 = vmatpush.bf16.msra.mxu0 %v2305
    %2363 = vmatpush.bf16.msra.mxu0 %v2303
    %2364 = vmatpush.bf16.msra.mxu0 %v2301
    %2365 = vmatpush.bf16.msra.mxu0 %v2299
    %2366 = vmatpush.bf16.msra.mxu0 %v2297
    %2367 = vmatpush.bf16.msra.mxu0 %v2295
    %2368 = vmatpush.bf16.msra.mxu0 %v2293
    %2369 = vmatpush.bf16.msra.mxu0 %v2291
    %2370 = vmatmul.bf16.gmra.mxu0 %v1806
    %v2371 = vpop.f32.mrf.mxu0
    %v2372 = vadd.f32 %v2349, %v2371
    %v2373 = vpop.f32.mrf.mxu0
    %v2374 = vadd.f32 %v2351, %v2373
    %2375 = vmatmul.bf16.gmra.mxu0 %v1793
    %v2376 = vpop.f32.mrf.mxu0
    %v2377 = vadd.f32 %v2354, %v2376
    %v2378 = vpop.f32.mrf.mxu0
    %v2379 = vadd.f32 %v2356, %v2378
    %2380 = vmatmul.bf16.gmra.mxu0 %v1813
    %v2381 = vpop.f32.mrf.mxu0
    %v2382 = vadd.f32 %v2359, %v2381
    %v2383 = vpop.f32.mrf.mxu0
    %2384 = vdwg.mxu0
    %2385 = vmatpush.bf16.msra.mxu0 %v2290
    %2386 = vmatpush.bf16.msra.mxu0 %v2288
    %2387 = vmatpush.bf16.msra.mxu0 %v2286
    %2388 = vmatpush.bf16.msra.mxu0 %v2284
    %2389 = vmatpush.bf16.msra.mxu0 %v2282
    %2390 = vmatpush.bf16.msra.mxu0 %v2280
    %2391 = vmatpush.bf16.msra.mxu0 %v2278
    %2392 = vmatpush.bf16.msra.mxu0 %v2276
    %2393 = vmatmul.bf16.gmra.mxu0 %v1803
    %v2394 = vpop.f32.mrf.mxu0
    %v2395 = vadd.f32 %v2166, %v2394
    %v2396 = vpop.f32.mrf.mxu0
    %v2397 = vadd.f32 %v2168, %v2396
    %2398 = vmatmul.bf16.gmra.mxu0 %v1791
    %v2399 = vpop.f32.mrf.mxu0
    %v2400 = vadd.f32 %v2171, %v2399
    %v2401 = vpop.f32.mrf.mxu0
    %v2402 = vadd.f32 %v2173, %v2401
    %2403 = vmatmul.bf16.gmra.mxu0 %v1810
    %v2404 = vpop.f32.mrf.mxu0
    %v2405 = vadd.f32 %v2176, %v2404
    %v2406 = vpop.f32.mrf.mxu0
    %2407 = vdwg.mxu0
    %2408 = vmatpush.bf16.msra.mxu0 %v2306
    %2409 = vmatpush.bf16.msra.mxu0 %v2304
    %2410 = vmatpush.bf16.msra.mxu0 %v2302
    %2411 = vmatpush.bf16.msra.mxu0 %v2300
    %2412 = vmatpush.bf16.msra.mxu0 %v2298
    %2413 = vmatpush.bf16.msra.mxu0 %v2296
    %2414 = vmatpush.bf16.msra.mxu0 %v2294
    %2415 = vmatpush.bf16.msra.mxu0 %v2292
    %2416 = vmatmul.bf16.gmra.mxu0 %v1806
    %v2417 = vpop.f32.mrf.mxu0
    %v2418 = vadd.f32 %v2395, %v2417
    %v2419 = vpop.f32.mrf.mxu0
    %v2420 = vadd.f32 %v2397, %v2419
    %2421 = vmatmul.bf16.gmra.mxu0 %v1793
    %v2422 = vpop.f32.mrf.mxu0
    %v2423 = vadd.f32 %v2400, %v2422
    %v2424 = vpop.f32.mrf.mxu0
    %v2425 = vadd.f32 %v2402, %v2424
    %2426 = vmatmul.bf16.gmra.mxu0 %v1813
    %v2427 = vpop.f32.mrf.mxu0
    %v2428 = vadd.f32 %v2405, %v2427
    %v2429 = vpop.f32.mrf.mxu0
    %2430 = vdwg.mxu0
    %v2431 = vld [vmem:[#allocation8 + $0x200] sm:$0xff]
    %v2432 = vld [vmem:[#allocation8 + $0x208] sm:$0xff]
    %v2433 = vld [vmem:[#allocation8 + $0x210] sm:$0xff]
    %v2434 = vld [vmem:[#allocation8 + $0x218] sm:$0xff]
    %v2435 = vld [vmem:[#allocation8 + $0x220] sm:$0xff]
    %v2436 = vld [vmem:[#allocation8 + $0x228] sm:$0xff]
    %v2437 = vld [vmem:[#allocation8 + $0x230] sm:$0xff]
    %v2438 = vld [vmem:[#allocation8 + $0x238] sm:$0xff]
    %v2439 = vld [vmem:[#allocation8 + $0x240] sm:$0xff]
    %v2440 = vld [vmem:[#allocation8 + $0x248] sm:$0xff]
    %v2441 = vld [vmem:[#allocation8 + $0x250] sm:$0xff]
    %v2442 = vld [vmem:[#allocation8 + $0x258] sm:$0xff]
    %v2443 = vld [vmem:[#allocation8 + $0x260] sm:$0xff]
    %v2444 = vld [vmem:[#allocation8 + $0x268] sm:$0xff]
    %v2445 = vld [vmem:[#allocation8 + $0x270] sm:$0xff]
    %v2446 = vld [vmem:[#allocation8 + $0x278] sm:$0xff]
    %v2447 = vld [vmem:[#allocation8 + $0x280] sm:$0xff]
    %v2448 = vld [vmem:[#allocation8 + $0x288] sm:$0xff]
    %v2449 = vld [vmem:[#allocation8 + $0x290] sm:$0xff]
    %v2450 = vld [vmem:[#allocation8 + $0x298] sm:$0xff]
    %v2451 = vld [vmem:[#allocation8 + $0x2a0] sm:$0xff]
    %v2452 = vld [vmem:[#allocation8 + $0x2a8] sm:$0xff]
    %v2453 = vld [vmem:[#allocation8 + $0x2b0] sm:$0xff]
    %v2454 = vld [vmem:[#allocation8 + $0x2b8] sm:$0xff]
    %v2455 = vld [vmem:[#allocation8 + $0x2c0] sm:$0xff]
    %v2456 = vld [vmem:[#allocation8 + $0x2c8] sm:$0xff]
    %v2457 = vld [vmem:[#allocation8 + $0x2d0] sm:$0xff]
    %v2458 = vld [vmem:[#allocation8 + $0x2d8] sm:$0xff]
    %v2459 = vld [vmem:[#allocation8 + $0x2e0] sm:$0xff]
    %v2460 = vld [vmem:[#allocation8 + $0x2e8] sm:$0xff]
    %v2461 = vld [vmem:[#allocation8 + $0x2f0] sm:$0xff]
    %v2462 = vld [vmem:[#allocation8 + $0x2f8] sm:$0xff]
    %v2467 = vrot.slane %v1803, 1
    %v2468 = vrot.slane %v1791, 1
    %v2469 = vsel %vm787, %v2467, %v2468
    %v2470 = vrot.slane %v1806, 1
    %v2471 = vrot.slane %v1793, 1
    %v2472 = vsel %vm787, %v2470, %v2471
    %v2473 = vrot.slane %v1810, 1
    %v2474 = vsel %vm787, %v2468, %v2473
    %v2475 = vrot.slane %v1813, 1
    %v2476 = vsel %vm787, %v2471, %v2475
    %v2515 = vunpack.c.l.b16 %v2431
    %v2516 = vunpack.c.h.b16 %v2431
    %v2517 = vunpack.c.l.b16 %v2432
    %v2518 = vunpack.c.h.b16 %v2432
    %v2519 = vunpack.c.l.b16 %v2433
    %v2520 = vunpack.c.h.b16 %v2433
    %v2521 = vunpack.c.l.b16 %v2434
    %v2522 = vunpack.c.h.b16 %v2434
    %v2523 = vunpack.c.l.b16 %v2435
    %v2524 = vunpack.c.h.b16 %v2435
    %v2525 = vunpack.c.l.b16 %v2436
    %v2526 = vunpack.c.h.b16 %v2436
    %v2527 = vunpack.c.l.b16 %v2437
    %v2528 = vunpack.c.h.b16 %v2437
    %v2529 = vunpack.c.l.b16 %v2438
    %v2530 = vunpack.c.h.b16 %v2438
    %v2531 = vunpack.c.l.b16 %v2439
    %v2532 = vunpack.c.h.b16 %v2439
    %v2533 = vunpack.c.l.b16 %v2440
    %v2534 = vunpack.c.h.b16 %v2440
    %v2535 = vunpack.c.l.b16 %v2441
    %v2536 = vunpack.c.h.b16 %v2441
    %v2537 = vunpack.c.l.b16 %v2442
    %v2538 = vunpack.c.h.b16 %v2442
    %v2539 = vunpack.c.l.b16 %v2443
    %v2540 = vunpack.c.h.b16 %v2443
    %v2541 = vunpack.c.l.b16 %v2444
    %v2542 = vunpack.c.h.b16 %v2444
    %v2543 = vunpack.c.l.b16 %v2445
    %v2544 = vunpack.c.h.b16 %v2445
    %v2545 = vunpack.c.l.b16 %v2446
    %v2546 = vunpack.c.h.b16 %v2446
    %v2547 = vunpack.c.l.b16 %v2447
    %v2548 = vunpack.c.h.b16 %v2447
    %v2549 = vunpack.c.l.b16 %v2448
    %v2550 = vunpack.c.h.b16 %v2448
    %v2551 = vunpack.c.l.b16 %v2449
    %v2552 = vunpack.c.h.b16 %v2449
    %v2553 = vunpack.c.l.b16 %v2450
    %v2554 = vunpack.c.h.b16 %v2450
    %v2555 = vunpack.c.l.b16 %v2451
    %v2556 = vunpack.c.h.b16 %v2451
    %v2557 = vunpack.c.l.b16 %v2452
    %v2558 = vunpack.c.h.b16 %v2452
    %v2559 = vunpack.c.l.b16 %v2453
    %v2560 = vunpack.c.h.b16 %v2453
    %v2561 = vunpack.c.l.b16 %v2454
    %v2562 = vunpack.c.h.b16 %v2454
    %v2563 = vunpack.c.l.b16 %v2455
    %v2564 = vunpack.c.h.b16 %v2455
    %v2565 = vunpack.c.l.b16 %v2456
    %v2566 = vunpack.c.h.b16 %v2456
    %v2567 = vunpack.c.l.b16 %v2457
    %v2568 = vunpack.c.h.b16 %v2457
    %v2569 = vunpack.c.l.b16 %v2458
    %v2570 = vunpack.c.h.b16 %v2458
    %v2571 = vunpack.c.l.b16 %v2459
    %v2572 = vunpack.c.h.b16 %v2459
    %v2573 = vunpack.c.l.b16 %v2460
    %v2574 = vunpack.c.h.b16 %v2460
    %v2575 = vunpack.c.l.b16 %v2461
    %v2576 = vunpack.c.h.b16 %v2461
    %v2577 = vunpack.c.l.b16 %v2462
    %v2578 = vunpack.c.h.b16 %v2462
    %v2579 = vpack.c.b16 %v2517, %v2515
    %v2580 = vpack.c.b16 %v2518, %v2516
    %v2581 = vpack.c.b16 %v2521, %v2519
    %v2582 = vpack.c.b16 %v2522, %v2520
    %v2583 = vpack.c.b16 %v2525, %v2523
    %v2584 = vpack.c.b16 %v2526, %v2524
    %v2585 = vpack.c.b16 %v2529, %v2527
    %v2586 = vpack.c.b16 %v2530, %v2528
    %v2587 = vpack.c.b16 %v2533, %v2531
    %v2588 = vpack.c.b16 %v2534, %v2532
    %v2589 = vpack.c.b16 %v2537, %v2535
    %v2590 = vpack.c.b16 %v2538, %v2536
    %v2591 = vpack.c.b16 %v2541, %v2539
    %v2592 = vpack.c.b16 %v2542, %v2540
    %v2593 = vpack.c.b16 %v2545, %v2543
    %v2594 = vpack.c.b16 %v2546, %v2544
    %v2595 = vpack.c.b16 %v2549, %v2547
    %v2596 = vpack.c.b16 %v2550, %v2548
    %v2597 = vpack.c.b16 %v2553, %v2551
    %v2598 = vpack.c.b16 %v2554, %v2552
    %v2599 = vpack.c.b16 %v2557, %v2555
    %v2600 = vpack.c.b16 %v2558, %v2556
    %v2601 = vpack.c.b16 %v2561, %v2559
    %v2602 = vpack.c.b16 %v2562, %v2560
    %v2603 = vpack.c.b16 %v2565, %v2563
    %v2604 = vpack.c.b16 %v2566, %v2564
    %v2605 = vpack.c.b16 %v2569, %v2567
    %v2606 = vpack.c.b16 %v2570, %v2568
    %v2607 = vpack.c.b16 %v2573, %v2571
    %v2608 = vpack.c.b16 %v2574, %v2572
    %v2609 = vpack.c.b16 %v2577, %v2575
    %v2610 = vpack.c.b16 %v2578, %v2576
    %2643 = vmatpush.bf16.msra.mxu0 %v2593
    %2644 = vmatpush.bf16.msra.mxu0 %v2591
    %2645 = vmatpush.bf16.msra.mxu0 %v2589
    %2646 = vmatpush.bf16.msra.mxu0 %v2587
    %2647 = vmatpush.bf16.msra.mxu0 %v2585
    %2648 = vmatpush.bf16.msra.mxu0 %v2583
    %2649 = vmatpush.bf16.msra.mxu0 %v2581
    %2650 = vmatpush.bf16.msra.mxu0 %v2579
    %2651 = vmatmul.bf16.gmra.mxu0 %v2469
    %v2652 = vpop.f32.mrf.mxu0
    %v2653 = vadd.f32 0.0, %v2652
    %v2654 = vpop.f32.mrf.mxu0
    %v2655 = vadd.f32 0.0, %v2654
    %2656 = vmatmul.bf16.gmra.mxu0 %v2474
    %v2657 = vpop.f32.mrf.mxu0
    %v2658 = vadd.f32 0.0, %v2657
    %v2659 = vpop.f32.mrf.mxu0
    %v2660 = vadd.f32 0.0, %v2659
    %2661 = vmatmul.bf16.gmra.mxu0 %v2473
    %v2662 = vpop.f32.mrf.mxu0
    %v2663 = vadd.f32 0.0, %v2662
    %v2664 = vpop.f32.mrf.mxu0
    %2665 = vdwg.mxu0
    %2666 = vmatpush.bf16.msra.mxu0 %v2609
    %2667 = vmatpush.bf16.msra.mxu0 %v2607
    %2668 = vmatpush.bf16.msra.mxu0 %v2605
    %2669 = vmatpush.bf16.msra.mxu0 %v2603
    %2670 = vmatpush.bf16.msra.mxu0 %v2601
    %2671 = vmatpush.bf16.msra.mxu0 %v2599
    %2672 = vmatpush.bf16.msra.mxu0 %v2597
    %2673 = vmatpush.bf16.msra.mxu0 %v2595
    %2674 = vmatmul.bf16.gmra.mxu0 %v2472
    %v2675 = vpop.f32.mrf.mxu0
    %v2676 = vadd.f32 %v2653, %v2675
    %v2677 = vpop.f32.mrf.mxu0
    %v2678 = vadd.f32 %v2655, %v2677
    %2679 = vmatmul.bf16.gmra.mxu0 %v2476
    %v2680 = vpop.f32.mrf.mxu0
    %v2681 = vadd.f32 %v2658, %v2680
    %v2682 = vpop.f32.mrf.mxu0
    %v2683 = vadd.f32 %v2660, %v2682
    %2684 = vmatmul.bf16.gmra.mxu0 %v2475
    %v2685 = vpop.f32.mrf.mxu0
    %v2686 = vadd.f32 %v2663, %v2685
    %v2687 = vpop.f32.mrf.mxu0
    %2688 = vdwg.mxu0
    %2689 = vmatpush.bf16.msra.mxu0 %v2594
    %2690 = vmatpush.bf16.msra.mxu0 %v2592
    %2691 = vmatpush.bf16.msra.mxu0 %v2590
    %2692 = vmatpush.bf16.msra.mxu0 %v2588
    %2693 = vmatpush.bf16.msra.mxu0 %v2586
    %2694 = vmatpush.bf16.msra.mxu0 %v2584
    %2695 = vmatpush.bf16.msra.mxu0 %v2582
    %2696 = vmatpush.bf16.msra.mxu0 %v2580
    %2697 = vmatmul.bf16.gmra.mxu0 %v2469
    %v2698 = vpop.f32.mrf.mxu0
    %v2699 = vadd.f32 0.0, %v2698
    %v2700 = vpop.f32.mrf.mxu0
    %v2701 = vadd.f32 0.0, %v2700
    %2702 = vmatmul.bf16.gmra.mxu0 %v2474
    %v2703 = vpop.f32.mrf.mxu0
    %v2704 = vadd.f32 0.0, %v2703
    %v2705 = vpop.f32.mrf.mxu0
    %v2706 = vadd.f32 0.0, %v2705
    %2707 = vmatmul.bf16.gmra.mxu0 %v2473
    %v2708 = vpop.f32.mrf.mxu0
    %v2709 = vadd.f32 0.0, %v2708
    %v2710 = vpop.f32.mrf.mxu0
    %2711 = vdwg.mxu0
    %2712 = vmatpush.bf16.msra.mxu0 %v2610
    %2713 = vmatpush.bf16.msra.mxu0 %v2608
    %2714 = vmatpush.bf16.msra.mxu0 %v2606
    %2715 = vmatpush.bf16.msra.mxu0 %v2604
    %2716 = vmatpush.bf16.msra.mxu0 %v2602
    %2717 = vmatpush.bf16.msra.mxu0 %v2600
    %2718 = vmatpush.bf16.msra.mxu0 %v2598
    %2719 = vmatpush.bf16.msra.mxu0 %v2596
    %2720 = vmatmul.bf16.gmra.mxu0 %v2472
    %v2721 = vpop.f32.mrf.mxu0
    %v2722 = vadd.f32 %v2699, %v2721
    %v2723 = vpop.f32.mrf.mxu0
    %v2724 = vadd.f32 %v2701, %v2723
    %2725 = vmatmul.bf16.gmra.mxu0 %v2476
    %v2726 = vpop.f32.mrf.mxu0
    %v2727 = vadd.f32 %v2704, %v2726
    %v2728 = vpop.f32.mrf.mxu0
    %v2729 = vadd.f32 %v2706, %v2728
    %2730 = vmatmul.bf16.gmra.mxu0 %v2475
    %v2731 = vpop.f32.mrf.mxu0
    %v2732 = vadd.f32 %v2709, %v2731
    %v2733 = vpop.f32.mrf.mxu0
    %2734 = vdwg.mxu0
    %v2735 = vadd.f32 %v2372, %v2676
    %v2736 = vadd.f32 %v2418, %v2722
    %v2737 = vadd.f32 %v2374, %v2678
    %v2738 = vadd.f32 %v2420, %v2724
    %v2739 = vadd.f32 %v2377, %v2681
    %v2740 = vadd.f32 %v2423, %v2727
    %v2741 = vadd.f32 %v2379, %v2683
    %v2742 = vadd.f32 %v2425, %v2729
    %v2743 = vadd.f32 %v2382, %v2686
    %v2744 = vadd.f32 %v2428, %v2732
    %v2745 = vld [vmem:[#allocation8 + $0x300] sm:$0xff]
    %v2746 = vld [vmem:[#allocation8 + $0x308] sm:$0xff]
    %v2747 = vld [vmem:[#allocation8 + $0x310] sm:$0xff]
    %v2748 = vld [vmem:[#allocation8 + $0x318] sm:$0xff]
    %v2749 = vld [vmem:[#allocation8 + $0x320] sm:$0xff]
    %v2750 = vld [vmem:[#allocation8 + $0x328] sm:$0xff]
    %v2751 = vld [vmem:[#allocation8 + $0x330] sm:$0xff]
    %v2752 = vld [vmem:[#allocation8 + $0x338] sm:$0xff]
    %v2753 = vld [vmem:[#allocation8 + $0x340] sm:$0xff]
    %v2754 = vld [vmem:[#allocation8 + $0x348] sm:$0xff]
    %v2755 = vld [vmem:[#allocation8 + $0x350] sm:$0xff]
    %v2756 = vld [vmem:[#allocation8 + $0x358] sm:$0xff]
    %v2757 = vld [vmem:[#allocation8 + $0x360] sm:$0xff]
    %v2758 = vld [vmem:[#allocation8 + $0x368] sm:$0xff]
    %v2759 = vld [vmem:[#allocation8 + $0x370] sm:$0xff]
    %v2760 = vld [vmem:[#allocation8 + $0x378] sm:$0xff]
    %v2761 = vld [vmem:[#allocation8 + $0x380] sm:$0xff]
    %v2762 = vld [vmem:[#allocation8 + $0x388] sm:$0xff]
    %v2763 = vld [vmem:[#allocation8 + $0x390] sm:$0xff]
    %v2764 = vld [vmem:[#allocation8 + $0x398] sm:$0xff]
    %v2765 = vld [vmem:[#allocation8 + $0x3a0] sm:$0xff]
    %v2766 = vld [vmem:[#allocation8 + $0x3a8] sm:$0xff]
    %v2767 = vld [vmem:[#allocation8 + $0x3b0] sm:$0xff]
    %v2768 = vld [vmem:[#allocation8 + $0x3b8] sm:$0xff]
    %v2769 = vld [vmem:[#allocation8 + $0x3c0] sm:$0xff]
    %v2770 = vld [vmem:[#allocation8 + $0x3c8] sm:$0xff]
    %v2771 = vld [vmem:[#allocation8 + $0x3d0] sm:$0xff]
    %v2772 = vld [vmem:[#allocation8 + $0x3d8] sm:$0xff]
    %v2773 = vld [vmem:[#allocation8 + $0x3e0] sm:$0xff]
    %v2774 = vld [vmem:[#allocation8 + $0x3e8] sm:$0xff]
    %v2775 = vld [vmem:[#allocation8 + $0x3f0] sm:$0xff]
    %v2776 = vld [vmem:[#allocation8 + $0x3f8] sm:$0xff]
    %v2777 = vrot.slane %v1879, 1
    %v2778 = vrot.slane %v1881, 2
    %v2779 = vor.u32 %v2777, %v2778
    %v2780 = vrot.slane %v1901, 1
    %v2781 = vrot.slane %v1886, 2
    %v2782 = vor.u32 %v2780, %v2781
    %v2783 = vsel %vm1098, %v2779, %v2782
    %v2784 = vrot.slane %v1890, 1
    %v2785 = vrot.slane %v1892, 2
    %v2786 = vor.u32 %v2784, %v2785
    %v2787 = vrot.slane %v1908, 1
    %v2788 = vrot.slane %v1897, 2
    %v2789 = vor.u32 %v2787, %v2788
    %v2790 = vsel %vm1098, %v2786, %v2789
    %v2791 = vrot.slane %v1915, 1
    %v2792 = vrot.slane %v1904, 2
    %v2793 = vor.u32 %v2791, %v2792
    %v2794 = vsel %vm1098, %v2782, %v2793
    %v2795 = vrot.slane %v1918, 1
    %v2796 = vrot.slane %v1911, 2
    %v2797 = vor.u32 %v2795, %v2796
    %v2798 = vsel %vm1098, %v2789, %v2797
    %v2837 = vunpack.c.l.b16 %v2745
    %v2838 = vunpack.c.h.b16 %v2745
    %v2839 = vunpack.c.l.b16 %v2746
    %v2840 = vunpack.c.h.b16 %v2746
    %v2841 = vunpack.c.l.b16 %v2747
    %v2842 = vunpack.c.h.b16 %v2747
    %v2843 = vunpack.c.l.b16 %v2748
    %v2844 = vunpack.c.h.b16 %v2748
    %v2845 = vunpack.c.l.b16 %v2749
    %v2846 = vunpack.c.h.b16 %v2749
    %v2847 = vunpack.c.l.b16 %v2750
    %v2848 = vunpack.c.h.b16 %v2750
    %v2849 = vunpack.c.l.b16 %v2751
    %v2850 = vunpack.c.h.b16 %v2751
    %v2851 = vunpack.c.l.b16 %v2752
    %v2852 = vunpack.c.h.b16 %v2752
    %v2853 = vunpack.c.l.b16 %v2753
    %v2854 = vunpack.c.h.b16 %v2753
    %v2855 = vunpack.c.l.b16 %v2754
    %v2856 = vunpack.c.h.b16 %v2754
    %v2857 = vunpack.c.l.b16 %v2755
    %v2858 = vunpack.c.h.b16 %v2755
    %v2859 = vunpack.c.l.b16 %v2756
    %v2860 = vunpack.c.h.b16 %v2756
    %v2861 = vunpack.c.l.b16 %v2757
    %v2862 = vunpack.c.h.b16 %v2757
    %v2863 = vunpack.c.l.b16 %v2758
    %v2864 = vunpack.c.h.b16 %v2758
    %v2865 = vunpack.c.l.b16 %v2759
    %v2866 = vunpack.c.h.b16 %v2759
    %v2867 = vunpack.c.l.b16 %v2760
    %v2868 = vunpack.c.h.b16 %v2760
    %v2869 = vunpack.c.l.b16 %v2761
    %v2870 = vunpack.c.h.b16 %v2761
    %v2871 = vunpack.c.l.b16 %v2762
    %v2872 = vunpack.c.h.b16 %v2762
    %v2873 = vunpack.c.l.b16 %v2763
    %v2874 = vunpack.c.h.b16 %v2763
    %v2875 = vunpack.c.l.b16 %v2764
    %v2876 = vunpack.c.h.b16 %v2764
    %v2877 = vunpack.c.l.b16 %v2765
    %v2878 = vunpack.c.h.b16 %v2765
    %v2879 = vunpack.c.l.b16 %v2766
    %v2880 = vunpack.c.h.b16 %v2766
    %v2881 = vunpack.c.l.b16 %v2767
    %v2882 = vunpack.c.h.b16 %v2767
    %v2883 = vunpack.c.l.b16 %v2768
    %v2884 = vunpack.c.h.b16 %v2768
    %v2885 = vunpack.c.l.b16 %v2769
    %v2886 = vunpack.c.h.b16 %v2769
    %v2887 = vunpack.c.l.b16 %v2770
    %v2888 = vunpack.c.h.b16 %v2770
    %v2889 = vunpack.c.l.b16 %v2771
    %v2890 = vunpack.c.h.b16 %v2771
    %v2891 = vunpack.c.l.b16 %v2772
    %v2892 = vunpack.c.h.b16 %v2772
    %v2893 = vunpack.c.l.b16 %v2773
    %v2894 = vunpack.c.h.b16 %v2773
    %v2895 = vunpack.c.l.b16 %v2774
    %v2896 = vunpack.c.h.b16 %v2774
    %v2897 = vunpack.c.l.b16 %v2775
    %v2898 = vunpack.c.h.b16 %v2775
    %v2899 = vunpack.c.l.b16 %v2776
    %v2900 = vunpack.c.h.b16 %v2776
    %v2901 = vpack.c.b16 %v2839, %v2837
    %v2902 = vpack.c.b16 %v2840, %v2838
    %v2903 = vpack.c.b16 %v2843, %v2841
    %v2904 = vpack.c.b16 %v2844, %v2842
    %v2905 = vpack.c.b16 %v2847, %v2845
    %v2906 = vpack.c.b16 %v2848, %v2846
    %v2907 = vpack.c.b16 %v2851, %v2849
    %v2908 = vpack.c.b16 %v2852, %v2850
    %v2909 = vpack.c.b16 %v2855, %v2853
    %v2910 = vpack.c.b16 %v2856, %v2854
    %v2911 = vpack.c.b16 %v2859, %v2857
    %v2912 = vpack.c.b16 %v2860, %v2858
    %v2913 = vpack.c.b16 %v2863, %v2861
    %v2914 = vpack.c.b16 %v2864, %v2862
    %v2915 = vpack.c.b16 %v2867, %v2865
    %v2916 = vpack.c.b16 %v2868, %v2866
    %v2917 = vpack.c.b16 %v2871, %v2869
    %v2918 = vpack.c.b16 %v2872, %v2870
    %v2919 = vpack.c.b16 %v2875, %v2873
    %v2920 = vpack.c.b16 %v2876, %v2874
    %v2921 = vpack.c.b16 %v2879, %v2877
    %v2922 = vpack.c.b16 %v2880, %v2878
    %v2923 = vpack.c.b16 %v2883, %v2881
    %v2924 = vpack.c.b16 %v2884, %v2882
    %v2925 = vpack.c.b16 %v2887, %v2885
    %v2926 = vpack.c.b16 %v2888, %v2886
    %v2927 = vpack.c.b16 %v2891, %v2889
    %v2928 = vpack.c.b16 %v2892, %v2890
    %v2929 = vpack.c.b16 %v2895, %v2893
    %v2930 = vpack.c.b16 %v2896, %v2894
    %v2931 = vpack.c.b16 %v2899, %v2897
    %v2932 = vpack.c.b16 %v2900, %v2898
    %2965 = vmatpush.bf16.msra.mxu0 %v2915
    %2966 = vmatpush.bf16.msra.mxu0 %v2913
    %2967 = vmatpush.bf16.msra.mxu0 %v2911
    %2968 = vmatpush.bf16.msra.mxu0 %v2909
    %2969 = vmatpush.bf16.msra.mxu0 %v2907
    %2970 = vmatpush.bf16.msra.mxu0 %v2905
    %2971 = vmatpush.bf16.msra.mxu0 %v2903
    %2972 = vmatpush.bf16.msra.mxu0 %v2901
    %2973 = vmatmul.bf16.gmra.mxu0 %v2783
    %v2974 = vpop.f32.mrf.mxu0
    %v2975 = vadd.f32 0.0, %v2974
    %v2976 = vpop.f32.mrf.mxu0
    %v2977 = vadd.f32 0.0, %v2976
    %2978 = vmatmul.bf16.gmra.mxu0 %v2794
    %v2979 = vpop.f32.mrf.mxu0
    %v2980 = vadd.f32 0.0, %v2979
    %v2981 = vpop.f32.mrf.mxu0
    %v2982 = vadd.f32 0.0, %v2981
    %2983 = vmatmul.bf16.gmra.mxu0 %v2793
    %v2984 = vpop.f32.mrf.mxu0
    %v2985 = vadd.f32 0.0, %v2984
    %v2986 = vpop.f32.mrf.mxu0
    %2987 = vdwg.mxu0
    %2988 = vmatpush.bf16.msra.mxu0 %v2931
    %2989 = vmatpush.bf16.msra.mxu0 %v2929
    %2990 = vmatpush.bf16.msra.mxu0 %v2927
    %2991 = vmatpush.bf16.msra.mxu0 %v2925
    %2992 = vmatpush.bf16.msra.mxu0 %v2923
    %2993 = vmatpush.bf16.msra.mxu0 %v2921
    %2994 = vmatpush.bf16.msra.mxu0 %v2919
    %2995 = vmatpush.bf16.msra.mxu0 %v2917
    %2996 = vmatmul.bf16.gmra.mxu0 %v2790
    %v2997 = vpop.f32.mrf.mxu0
    %v2998 = vadd.f32 %v2975, %v2997
    %v2999 = vpop.f32.mrf.mxu0
    %v3000 = vadd.f32 %v2977, %v2999
    %3001 = vmatmul.bf16.gmra.mxu0 %v2798
    %v3002 = vpop.f32.mrf.mxu0
    %v3003 = vadd.f32 %v2980, %v3002
    %v3004 = vpop.f32.mrf.mxu0
    %v3005 = vadd.f32 %v2982, %v3004
    %3006 = vmatmul.bf16.gmra.mxu0 %v2797
    %v3007 = vpop.f32.mrf.mxu0
    %v3008 = vadd.f32 %v2985, %v3007
    %v3009 = vpop.f32.mrf.mxu0
    %3010 = vdwg.mxu0
    %3011 = vmatpush.bf16.msra.mxu0 %v2916
    %3012 = vmatpush.bf16.msra.mxu0 %v2914
    %3013 = vmatpush.bf16.msra.mxu0 %v2912
    %3014 = vmatpush.bf16.msra.mxu0 %v2910
    %3015 = vmatpush.bf16.msra.mxu0 %v2908
    %3016 = vmatpush.bf16.msra.mxu0 %v2906
    %3017 = vmatpush.bf16.msra.mxu0 %v2904
    %3018 = vmatpush.bf16.msra.mxu0 %v2902
    %3019 = vmatmul.bf16.gmra.mxu0 %v2783
    %v3020 = vpop.f32.mrf.mxu0
    %v3021 = vadd.f32 0.0, %v3020
    %v3022 = vpop.f32.mrf.mxu0
    %v3023 = vadd.f32 0.0, %v3022
    %3024 = vmatmul.bf16.gmra.mxu0 %v2794
    %v3025 = vpop.f32.mrf.mxu0
    %v3026 = vadd.f32 0.0, %v3025
    %v3027 = vpop.f32.mrf.mxu0
    %v3028 = vadd.f32 0.0, %v3027
    %3029 = vmatmul.bf16.gmra.mxu0 %v2793
    %v3030 = vpop.f32.mrf.mxu0
    %v3031 = vadd.f32 0.0, %v3030
    %v3032 = vpop.f32.mrf.mxu0
    %3033 = vdwg.mxu0
    %3034 = vmatpush.bf16.msra.mxu0 %v2932
    %3035 = vmatpush.bf16.msra.mxu0 %v2930
    %3036 = vmatpush.bf16.msra.mxu0 %v2928
    %3037 = vmatpush.bf16.msra.mxu0 %v2926
    %3038 = vmatpush.bf16.msra.mxu0 %v2924
    %3039 = vmatpush.bf16.msra.mxu0 %v2922
    %3040 = vmatpush.bf16.msra.mxu0 %v2920
    %3041 = vmatpush.bf16.msra.mxu0 %v2918
    %3042 = vmatmul.bf16.gmra.mxu0 %v2790
    %v3043 = vpop.f32.mrf.mxu0
    %v3044 = vadd.f32 %v3021, %v3043
    %v3045 = vpop.f32.mrf.mxu0
    %v3046 = vadd.f32 %v3023, %v3045
    %3047 = vmatmul.bf16.gmra.mxu0 %v2798
    %v3048 = vpop.f32.mrf.mxu0
    %v3049 = vadd.f32 %v3026, %v3048
    %v3050 = vpop.f32.mrf.mxu0
    %v3051 = vadd.f32 %v3028, %v3050
    %3052 = vmatmul.bf16.gmra.mxu0 %v2797
    %v3053 = vpop.f32.mrf.mxu0
    %v3054 = vadd.f32 %v3031, %v3053
    %v3055 = vpop.f32.mrf.mxu0
    %3056 = vdwg.mxu0
    %v3057 = vadd.f32 %v2735, %v2998
    %v3058 = vadd.f32 %v2736, %v3044
    %v3059 = vadd.f32 %v2737, %v3000
    %v3060 = vadd.f32 %v2738, %v3046
    %v3061 = vadd.f32 %v2739, %v3003
    %v3062 = vadd.f32 %v2740, %v3049
    %v3063 = vadd.f32 %v2741, %v3005
    %v3064 = vadd.f32 %v2742, %v3051
    %v3065 = vadd.f32 %v2743, %v3008
    %v3066 = vadd.f32 %v2744, %v3054
    %v3067 = vld [vmem:[#allocation8 + $0x400] sm:$0xff]
    %v3068 = vld [vmem:[#allocation8 + $0x408] sm:$0xff]
    %v3069 = vld [vmem:[#allocation8 + $0x410] sm:$0xff]
    %v3070 = vld [vmem:[#allocation8 + $0x418] sm:$0xff]
    %v3071 = vld [vmem:[#allocation8 + $0x420] sm:$0xff]
    %v3072 = vld [vmem:[#allocation8 + $0x428] sm:$0xff]
    %v3073 = vld [vmem:[#allocation8 + $0x430] sm:$0xff]
    %v3074 = vld [vmem:[#allocation8 + $0x438] sm:$0xff]
    %v3075 = vld [vmem:[#allocation8 + $0x440] sm:$0xff]
    %v3076 = vld [vmem:[#allocation8 + $0x448] sm:$0xff]
    %v3077 = vld [vmem:[#allocation8 + $0x450] sm:$0xff]
    %v3078 = vld [vmem:[#allocation8 + $0x458] sm:$0xff]
    %v3079 = vld [vmem:[#allocation8 + $0x460] sm:$0xff]
    %v3080 = vld [vmem:[#allocation8 + $0x468] sm:$0xff]
    %v3081 = vld [vmem:[#allocation8 + $0x470] sm:$0xff]
    %v3082 = vld [vmem:[#allocation8 + $0x478] sm:$0xff]
    %v3083 = vld [vmem:[#allocation8 + $0x480] sm:$0xff]
    %v3084 = vld [vmem:[#allocation8 + $0x488] sm:$0xff]
    %v3085 = vld [vmem:[#allocation8 + $0x490] sm:$0xff]
    %v3086 = vld [vmem:[#allocation8 + $0x498] sm:$0xff]
    %v3087 = vld [vmem:[#allocation8 + $0x4a0] sm:$0xff]
    %v3088 = vld [vmem:[#allocation8 + $0x4a8] sm:$0xff]
    %v3089 = vld [vmem:[#allocation8 + $0x4b0] sm:$0xff]
    %v3090 = vld [vmem:[#allocation8 + $0x4b8] sm:$0xff]
    %v3091 = vld [vmem:[#allocation8 + $0x4c0] sm:$0xff]
    %v3092 = vld [vmem:[#allocation8 + $0x4c8] sm:$0xff]
    %v3093 = vld [vmem:[#allocation8 + $0x4d0] sm:$0xff]
    %v3094 = vld [vmem:[#allocation8 + $0x4d8] sm:$0xff]
    %v3095 = vld [vmem:[#allocation8 + $0x4e0] sm:$0xff]
    %v3096 = vld [vmem:[#allocation8 + $0x4e8] sm:$0xff]
    %v3097 = vld [vmem:[#allocation8 + $0x4f0] sm:$0xff]
    %v3098 = vld [vmem:[#allocation8 + $0x4f8] sm:$0xff]
    %v3099 = vrot.slane %v1803, 2
    %v3100 = vrot.slane %v1791, 2
    %v3101 = vsel %vm1421, %v3099, %v3100
    %v3102 = vrot.slane %v1806, 2
    %v3103 = vrot.slane %v1793, 2
    %v3104 = vsel %vm1421, %v3102, %v3103
    %v3105 = vrot.slane %v1810, 2
    %v3106 = vsel %vm1421, %v3100, %v3105
    %v3107 = vrot.slane %v1813, 2
    %v3108 = vsel %vm1421, %v3103, %v3107
    %v3147 = vunpack.c.l.b16 %v3067
    %v3148 = vunpack.c.h.b16 %v3067
    %v3149 = vunpack.c.l.b16 %v3068
    %v3150 = vunpack.c.h.b16 %v3068
    %v3151 = vunpack.c.l.b16 %v3069
    %v3152 = vunpack.c.h.b16 %v3069
    %v3153 = vunpack.c.l.b16 %v3070
    %v3154 = vunpack.c.h.b16 %v3070
    %v3155 = vunpack.c.l.b16 %v3071
    %v3156 = vunpack.c.h.b16 %v3071
    %v3157 = vunpack.c.l.b16 %v3072
    %v3158 = vunpack.c.h.b16 %v3072
    %v3159 = vunpack.c.l.b16 %v3073
    %v3160 = vunpack.c.h.b16 %v3073
    %v3161 = vunpack.c.l.b16 %v3074
    %v3162 = vunpack.c.h.b16 %v3074
    %v3163 = vunpack.c.l.b16 %v3075
    %v3164 = vunpack.c.h.b16 %v3075
    %v3165 = vunpack.c.l.b16 %v3076
    %v3166 = vunpack.c.h.b16 %v3076
    %v3167 = vunpack.c.l.b16 %v3077
    %v3168 = vunpack.c.h.b16 %v3077
    %v3169 = vunpack.c.l.b16 %v3078
    %v3170 = vunpack.c.h.b16 %v3078
    %v3171 = vunpack.c.l.b16 %v3079
    %v3172 = vunpack.c.h.b16 %v3079
    %v3173 = vunpack.c.l.b16 %v3080
    %v3174 = vunpack.c.h.b16 %v3080
    %v3175 = vunpack.c.l.b16 %v3081
    %v3176 = vunpack.c.h.b16 %v3081
    %v3177 = vunpack.c.l.b16 %v3082
    %v3178 = vunpack.c.h.b16 %v3082
    %v3179 = vunpack.c.l.b16 %v3083
    %v3180 = vunpack.c.h.b16 %v3083
    %v3181 = vunpack.c.l.b16 %v3084
    %v3182 = vunpack.c.h.b16 %v3084
    %v3183 = vunpack.c.l.b16 %v3085
    %v3184 = vunpack.c.h.b16 %v3085
    %v3185 = vunpack.c.l.b16 %v3086
    %v3186 = vunpack.c.h.b16 %v3086
    %v3187 = vunpack.c.l.b16 %v3087
    %v3188 = vunpack.c.h.b16 %v3087
    %v3189 = vunpack.c.l.b16 %v3088
    %v3190 = vunpack.c.h.b16 %v3088
    %v3191 = vunpack.c.l.b16 %v3089
    %v3192 = vunpack.c.h.b16 %v3089
    %v3193 = vunpack.c.l.b16 %v3090
    %v3194 = vunpack.c.h.b16 %v3090
    %v3195 = vunpack.c.l.b16 %v3091
    %v3196 = vunpack.c.h.b16 %v3091
    %v3197 = vunpack.c.l.b16 %v3092
    %v3198 = vunpack.c.h.b16 %v3092
    %v3199 = vunpack.c.l.b16 %v3093
    %v3200 = vunpack.c.h.b16 %v3093
    %v3201 = vunpack.c.l.b16 %v3094
    %v3202 = vunpack.c.h.b16 %v3094
    %v3203 = vunpack.c.l.b16 %v3095
    %v3204 = vunpack.c.h.b16 %v3095
    %v3205 = vunpack.c.l.b16 %v3096
    %v3206 = vunpack.c.h.b16 %v3096
    %v3207 = vunpack.c.l.b16 %v3097
    %v3208 = vunpack.c.h.b16 %v3097
    %v3209 = vunpack.c.l.b16 %v3098
    %v3210 = vunpack.c.h.b16 %v3098
    %v3211 = vpack.c.b16 %v3149, %v3147
    %v3212 = vpack.c.b16 %v3150, %v3148
    %v3213 = vpack.c.b16 %v3153, %v3151
    %v3214 = vpack.c.b16 %v3154, %v3152
    %v3215 = vpack.c.b16 %v3157, %v3155
    %v3216 = vpack.c.b16 %v3158, %v3156
    %v3217 = vpack.c.b16 %v3161, %v3159
    %v3218 = vpack.c.b16 %v3162, %v3160
    %v3219 = vpack.c.b16 %v3165, %v3163
    %v3220 = vpack.c.b16 %v3166, %v3164
    %v3221 = vpack.c.b16 %v3169, %v3167
    %v3222 = vpack.c.b16 %v3170, %v3168
    %v3223 = vpack.c.b16 %v3173, %v3171
    %v3224 = vpack.c.b16 %v3174, %v3172
    %v3225 = vpack.c.b16 %v3177, %v3175
    %v3226 = vpack.c.b16 %v3178, %v3176
    %v3227 = vpack.c.b16 %v3181, %v3179
    %v3228 = vpack.c.b16 %v3182, %v3180
    %v3229 = vpack.c.b16 %v3185, %v3183
    %v3230 = vpack.c.b16 %v3186, %v3184
    %v3231 = vpack.c.b16 %v3189, %v3187
    %v3232 = vpack.c.b16 %v3190, %v3188
    %v3233 = vpack.c.b16 %v3193, %v3191
    %v3234 = vpack.c.b16 %v3194, %v3192
    %v3235 = vpack.c.b16 %v3197, %v3195
    %v3236 = vpack.c.b16 %v3198, %v3196
    %v3237 = vpack.c.b16 %v3201, %v3199
    %v3238 = vpack.c.b16 %v3202, %v3200
    %v3239 = vpack.c.b16 %v3205, %v3203
    %v3240 = vpack.c.b16 %v3206, %v3204
    %v3241 = vpack.c.b16 %v3209, %v3207
    %v3242 = vpack.c.b16 %v3210, %v3208
    %3275 = vmatpush.bf16.msra.mxu0 %v3225
    %3276 = vmatpush.bf16.msra.mxu0 %v3223
    %3277 = vmatpush.bf16.msra.mxu0 %v3221
    %3278 = vmatpush.bf16.msra.mxu0 %v3219
    %3279 = vmatpush.bf16.msra.mxu0 %v3217
    %3280 = vmatpush.bf16.msra.mxu0 %v3215
    %3281 = vmatpush.bf16.msra.mxu0 %v3213
    %3282 = vmatpush.bf16.msra.mxu0 %v3211
    %3283 = vmatmul.bf16.gmra.mxu0 %v3101
    %v3284 = vpop.f32.mrf.mxu0
    %v3285 = vadd.f32 0.0, %v3284
    %v3286 = vpop.f32.mrf.mxu0
    %v3287 = vadd.f32 0.0, %v3286
    %3288 = vmatmul.bf16.gmra.mxu0 %v3106
    %v3289 = vpop.f32.mrf.mxu0
    %v3290 = vadd.f32 0.0, %v3289
    %v3291 = vpop.f32.mrf.mxu0
    %v3292 = vadd.f32 0.0, %v3291
    %3293 = vmatmul.bf16.gmra.mxu0 %v3105
    %v3294 = vpop.f32.mrf.mxu0
    %v3295 = vadd.f32 0.0, %v3294
    %v3296 = vpop.f32.mrf.mxu0
    %3297 = vdwg.mxu0
    %3298 = vmatpush.bf16.msra.mxu0 %v3241
    %3299 = vmatpush.bf16.msra.mxu0 %v3239
    %3300 = vmatpush.bf16.msra.mxu0 %v3237
    %3301 = vmatpush.bf16.msra.mxu0 %v3235
    %3302 = vmatpush.bf16.msra.mxu0 %v3233
    %3303 = vmatpush.bf16.msra.mxu0 %v3231
    %3304 = vmatpush.bf16.msra.mxu0 %v3229
    %3305 = vmatpush.bf16.msra.mxu0 %v3227
    %3306 = vmatmul.bf16.gmra.mxu0 %v3104
    %v3307 = vpop.f32.mrf.mxu0
    %v3308 = vadd.f32 %v3285, %v3307
    %v3309 = vpop.f32.mrf.mxu0
    %v3310 = vadd.f32 %v3287, %v3309
    %3311 = vmatmul.bf16.gmra.mxu0 %v3108
    %v3312 = vpop.f32.mrf.mxu0
    %v3313 = vadd.f32 %v3290, %v3312
    %v3314 = vpop.f32.mrf.mxu0
    %v3315 = vadd.f32 %v3292, %v3314
    %3316 = vmatmul.bf16.gmra.mxu0 %v3107
    %v3317 = vpop.f32.mrf.mxu0
    %v3318 = vadd.f32 %v3295, %v3317
    %v3319 = vpop.f32.mrf.mxu0
    %3320 = vdwg.mxu0
    %3321 = vmatpush.bf16.msra.mxu0 %v3226
    %3322 = vmatpush.bf16.msra.mxu0 %v3224
    %3323 = vmatpush.bf16.msra.mxu0 %v3222
    %3324 = vmatpush.bf16.msra.mxu0 %v3220
    %3325 = vmatpush.bf16.msra.mxu0 %v3218
    %3326 = vmatpush.bf16.msra.mxu0 %v3216
    %3327 = vmatpush.bf16.msra.mxu0 %v3214
    %3328 = vmatpush.bf16.msra.mxu0 %v3212
    %3329 = vmatmul.bf16.gmra.mxu0 %v3101
    %v3330 = vpop.f32.mrf.mxu0
    %v3331 = vadd.f32 0.0, %v3330
    %v3332 = vpop.f32.mrf.mxu0
    %v3333 = vadd.f32 0.0, %v3332
    %3334 = vmatmul.bf16.gmra.mxu0 %v3106
    %v3335 = vpop.f32.mrf.mxu0
    %v3336 = vadd.f32 0.0, %v3335
    %v3337 = vpop.f32.mrf.mxu0
    %v3338 = vadd.f32 0.0, %v3337
    %3339 = vmatmul.bf16.gmra.mxu0 %v3105
    %v3340 = vpop.f32.mrf.mxu0
    %v3341 = vadd.f32 0.0, %v3340
    %v3342 = vpop.f32.mrf.mxu0
    %3343 = vdwg.mxu0
    %3344 = vmatpush.bf16.msra.mxu0 %v3242
    %3345 = vmatpush.bf16.msra.mxu0 %v3240
    %3346 = vmatpush.bf16.msra.mxu0 %v3238
    %3347 = vmatpush.bf16.msra.mxu0 %v3236
    %3348 = vmatpush.bf16.msra.mxu0 %v3234
    %3349 = vmatpush.bf16.msra.mxu0 %v3232
    %3350 = vmatpush.bf16.msra.mxu0 %v3230
    %3351 = vmatpush.bf16.msra.mxu0 %v3228
    %3352 = vmatmul.bf16.gmra.mxu0 %v3104
    %v3353 = vpop.f32.mrf.mxu0
    %v3354 = vadd.f32 %v3331, %v3353
    %v3355 = vpop.f32.mrf.mxu0
    %v3356 = vadd.f32 %v3333, %v3355
    %3357 = vmatmul.bf16.gmra.mxu0 %v3108
    %v3358 = vpop.f32.mrf.mxu0
    %v3359 = vadd.f32 %v3336, %v3358
    %v3360 = vpop.f32.mrf.mxu0
    %v3361 = vadd.f32 %v3338, %v3360
    %3362 = vmatmul.bf16.gmra.mxu0 %v3107
    %v3363 = vpop.f32.mrf.mxu0
    %v3364 = vadd.f32 %v3341, %v3363
    %v3365 = vpop.f32.mrf.mxu0
    %3366 = vdwg.mxu0
    %v3367 = vadd.f32 %v3057, %v3308
    %v3368 = vadd.f32 %v3058, %v3354
    %v3369 = vadd.f32 %v3059, %v3310
    %v3370 = vadd.f32 %v3060, %v3356
    %v3371 = vadd.f32 %v3061, %v3313
    %v3372 = vadd.f32 %v3062, %v3359
    %v3373 = vadd.f32 %v3063, %v3315
    %v3374 = vadd.f32 %v3064, %v3361
    %v3375 = vadd.f32 %v3065, %v3318
    %v3376 = vadd.f32 %v3066, %v3364
    %v3377 = vld [vmem:[%s5] sm:$0x3]
    %v3379 = vperm.slane %v3377, 0
    %v3380 = vperm.slane %v3377, 1
    %v3383 = vadd.f32 %v3367, %v3379
    %v3384 = vadd.f32 %v3368, %v3380
    %v3385 = vadd.f32 %v3369, %v3379
    %v3386 = vadd.f32 %v3370, %v3380
    %v3387 = vadd.f32 %v3371, %v3379
    %v3388 = vadd.f32 %v3372, %v3380
    %v3389 = vadd.f32 %v3373, %v3379
    %v3390 = vadd.f32 %v3374, %v3380
    %v3391 = vadd.f32 %v3375, %v3379
    %v3392 = vadd.f32 %v3376, %v3380
    %v3393 = vld [vmem:[#allocation5] sm:$0xff]
    %v3394 = vld [vmem:[#allocation5 + $0x8] sm:$0xff]
    %v3395 = vld [vmem:[#allocation5 + $0x10] sm:$0xff]
    %v3396 = vld [vmem:[#allocation5 + $0x18] sm:$0xff]
    %vm3401 = vcmask 1041408
    %v3402 = vrot.slane %v3393, 6
    %v3403 = vrot.slane %v3394, 6
    %v3404 = vrot.slane %v3395, 6
    %v3405 = vsel %vm3401, %v3402, %v3404
    %v3406 = vrot.slane %v3396, 6
    %v3407 = vsel %vm3401, %v3403, %v3406
    %v3414 = vadd.f32 %v3383, %v3402
    %v3415 = vadd.f32 %v3384, %v3403
    %v3416 = vadd.f32 %v3385, %v3405
    %v3417 = vadd.f32 %v3386, %v3407
    %v3418 = vadd.f32 %v3387, %v3404
    %v3419 = vadd.f32 %v3388, %v3406
    %vm3426 = vcmask 1045504
    %v3427 = vrot.slane %v3414, 2
    %v3428 = vrot.slane %v3416, 2
    %v3429 = vsel %vm3426, %v3427, %v3428
    %v3430 = vrot.slane %v3415, 2
    %v3431 = vrot.slane %v3417, 2
    %v3432 = vsel %vm3426, %v3430, %v3431
    %v3433 = vrot.slane %v3418, 2
    %v3434 = vsel %vm3426, %v3428, %v3433
    %v3435 = vrot.slane %v3419, 2
    %v3436 = vsel %vm3426, %v3431, %v3435
    %3441 = vst [vmem:[#allocation10] sm:$0xff] %v3429
    %3442 = vst [vmem:[#allocation10 + $0x8] sm:$0xff] %v3432
    %3443 = vst [vmem:[#allocation10 + $0x10] sm:$0xff] %v3434
    %3444 = vst [vmem:[#allocation10 + $0x18] sm:$0xff] %v3436
    %v3445 = vld [vmem:[#allocation5 + $0x20] sm:$0xff]
    %v3446 = vld [vmem:[#allocation5 + $0x28] sm:$0xff]
    %v3447 = vld [vmem:[#allocation5 + $0x30] sm:$0xff]
    %v3448 = vld [vmem:[#allocation5 + $0x38] sm:$0xff]
    %v3453 = vrot.slane %v3445, 2
    %v3454 = vrot.slane %v3446, 2
    %v3455 = vrot.slane %v3447, 2
    %v3456 = vsel %vm3426, %v3453, %v3455
    %v3457 = vrot.slane %v3448, 2
    %v3458 = vsel %vm3426, %v3454, %v3457
    %v3465 = vadd.f32 %v3387, %v3453
    %v3466 = vadd.f32 %v3388, %v3454
    %v3467 = vadd.f32 %v3389, %v3456
    %v3468 = vadd.f32 %v3390, %v3458
    %v3469 = vadd.f32 %v3391, %v3455
    %v3470 = vadd.f32 %v3392, %v3457
    %v3477 = vrot.slane %v3465, 6
    %v3478 = vrot.slane %v3467, 6
    %v3479 = vsel %vm3401, %v3477, %v3478
    %v3480 = vrot.slane %v3466, 6
    %v3481 = vrot.slane %v3468, 6
    %v3482 = vsel %vm3401, %v3480, %v3481
    %v3483 = vrot.slane %v3469, 6
    %v3484 = vsel %vm3401, %v3478, %v3483
    %v3485 = vrot.slane %v3470, 6
    %v3486 = vsel %vm3401, %v3481, %v3485
    %3491 = vst [vmem:[#allocation10 + $0x20] sm:$0xff] %v3479
    %3492 = vst [vmem:[#allocation10 + $0x28] sm:$0xff] %v3482
    %3493 = vst [vmem:[#allocation10 + $0x30] sm:$0xff] %v3484
    %3494 = vst [vmem:[#allocation10 + $0x38] sm:$0xff] %v3486
    // Predicated region
    $region46: #{tpu_custom_call.1} parent=1 // pred_check
      _
    $region47: #{tpu_custom_call.1} parent=1 // pred_check_branch
      %3496 = sbr.rel (0) target = $region49
    $region48: #{tpu_custom_call.1} parent=1 // pred_region
      %3498 = vsyncadd [#allocation4], 0
      %s3499 = sshll.u32 [#allocation10], 4
      %s3500 = int_to_ptr.vmem [resolvable:$true] %s3499
      %s3501 = sshll.u32 %s7, 4
      %s3502 = int_to_ptr.hbm [resolvable:$true] %s3501
      %3507 = dma.vmem_to_hbm [thread:$0]  %s3500, 1024, %s3502, [#allocation4], 256, 256, 16
    $region49: #{tpu_custom_call.1} parent=1 // pred_fallthru
      _
    // Predicated region
    $region50: #{tpu_custom_call.1} parent=1 // pred_check
      _
    $region51: #{tpu_custom_call.1} parent=1 // pred_check_branch
      %3509 = sbr.rel (0) target = $region53
    $region52: #{tpu_custom_call.1} parent=1 // pred_region
      %3511 = dma.done [#allocation4], 1024
    $region53: #{tpu_custom_call.1} parent=1 // pred_fallthru
      _
    %3512 = vsyncpa [#allocation3], 1
    %3513 = vsyncpa [#allocation6], 1
    %3514 = vsyncpa [#allocation9], 1
    %3515 = vsyncpa [#allocation4], 1

</llo_original>
